<compile_context>
chip_gen: v7x
topology: tpu7x:2x2x1
jax: 0.10.0
libtpu: 0.0.40
codegen_flags: <defaults>
</compile_context>

<pallas_src>
import functools
import math

import jax
import jax.numpy as jnp
from jax import lax
from jax.experimental import pallas as pl
from jax.experimental.pallas import tpu as pltpu


def _mha_kernel(num_heads, head_dim, scale, compute_dtype,
                q_ref, k_ref, v_ref,
                wq_ref, wk_ref, wv_ref,
                bq_ref, bk_ref, bv_ref,
                wo_ref, bo_ref,
                o_ref):
    """Multi-head attention for ONE batch element (one grid step).

    q_ref: (L, E); k_ref/v_ref: (S, E).
    wq/wk/wv_ref: (E, E) = W^T; bq/bk/bv_ref: (1, E).
    wo_ref: (E, E) = Wo^T; bo_ref: (1, E).
    o_ref: (L, E).
    """
    L, E = q_ref.shape
    cd = compute_dtype

    # ---- in-projection: three exact-sized matmuls (no 3x-oversized fused QKV).
    q = jnp.dot(q_ref[...].astype(cd), wq_ref[...].astype(cd),
                preferred_element_type=jnp.float32) + bq_ref[...]
    k = jnp.dot(k_ref[...].astype(cd), wk_ref[...].astype(cd),
                preferred_element_type=jnp.float32) + bk_ref[...]
    v = jnp.dot(v_ref[...].astype(cd), wv_ref[...].astype(cd),
                preferred_element_type=jnp.float32) + bv_ref[...]
    q = q * scale                                   # scale folded into Q once

    # ---- per-head scores, contracting the LAST dims of q_h and k_h (no k.T).
    dn = (((1,), (1,)), ((), ()))
    scores = []
    for h in range(num_heads):
        lo = h * head_dim
        qh = q[:, lo:lo + head_dim].astype(cd)       # (L, Dh)
        kh = k[:, lo:lo + head_dim].astype(cd)       # (S, Dh)
        scores.append(lax.dot_general(qh, kh, dn,
                                      preferred_element_type=jnp.float32))

    # ---- softmax batched across heads: one max/exp/sum/reciprocal pass on the
    #      sublane-stacked (H*L, S) score array instead of H separate passes.
    s_all = jnp.concatenate(scores, axis=0)          # (H*L, S)
    m = jnp.max(s_all, axis=-1, keepdims=True)
    p_all = jnp.exp(s_all - m)
    denom = jnp.sum(p_all, axis=-1, keepdims=True)
    inv = pl.reciprocal(denom, approx=True)          # EUP slot
    inv = inv * (2.0 - denom * inv)                  # one Newton step -> f32 acc.

    # ---- per-head P@V (sublane slices of p_all are cheap), then lane-concat.
    heads = []
    for h in range(num_heads):
        lo = h * head_dim
        ph = p_all[h * L:(h + 1) * L, :].astype(cd)  # (L, S)
        vh = v[:, lo:lo + head_dim].astype(cd)       # (S, Dh)
        ih = inv[h * L:(h + 1) * L, :]               # (L, 1)
        heads.append(jnp.dot(ph, vh, preferred_element_type=jnp.float32) * ih)
    attn = jnp.concatenate(heads, axis=-1)           # (L, E)

    # ---- out-projection: single matmul over the full E contraction.
    out = jnp.dot(attn.astype(cd), wo_ref[...].astype(cd),
                  preferred_element_type=jnp.float32) + bo_ref[...]
    o_ref[...] = out.astype(o_ref.dtype)


def attn_forward(query, value, key, params, num_heads, use_bf16=False):
    """Mirrors Attn.forward(query, value, key) -> MultiheadAttention(query, key, value).
    Inputs are seq-first: query (L, N, E); key/value (S, N, E). Output (L, N, E)."""
    L, N, E = query.shape
    S = key.shape[0]
    assert E % num_heads == 0
    head_dim = E // num_heads
    scale = 1.0 / math.sqrt(head_dim)
    compute_dtype = jnp.bfloat16 if use_bf16 else query.dtype

    # Batch-major layout so one grid step = one batch (block-diagonal attention,
    # no cross-batch score waste).  Transposes are tiny relative to the N^2 work
    # they remove, and the batch axis becomes a "parallel" (megacore-shardable)
    # grid dimension.
    q_b = jnp.transpose(query, (1, 0, 2))   # (N, L, E)
    k_b = jnp.transpose(key, (1, 0, 2))     # (N, S, E)
    v_b = jnp.transpose(value, (1, 0, 2))   # (N, S, E)

    # Weight prep (tiny): separate per-projection weights/biases (no fused 3E).
    in_w = params["in_proj_weight"]          # (3E, E)
    in_b = params["in_proj_bias"]            # (3E,)
    wq_t = in_w[0:E].T                       # (E, E)
    wk_t = in_w[E:2 * E].T
    wv_t = in_w[2 * E:3 * E].T
    bq = in_b[0:E].reshape(1, E)
    bk = in_b[E:2 * E].reshape(1, E)
    bv = in_b[2 * E:3 * E].reshape(1, E)
    wo_t = params["out_proj_weight"].T       # (E, E)
    bo = params["out_proj_bias"].reshape(1, E)

    kernel = functools.partial(_mha_kernel, num_heads, head_dim, scale,
                               compute_dtype)

    rep = lambda i: (0, 0)   # weights/biases: same block every step -> resident

    out_b = pl.pallas_call(
        kernel,
        out_shape=jax.ShapeDtypeStruct((N, L, E), query.dtype),
        grid=(N,),
        in_specs=[
            pl.BlockSpec((None, L, E), lambda i: (i, 0, 0)),   # q  (per batch)
            pl.BlockSpec((None, S, E), lambda i: (i, 0, 0)),   # k  (per batch)
            pl.BlockSpec((None, S, E), lambda i: (i, 0, 0)),   # v  (per batch)
            pl.BlockSpec((E, E), rep),                         # Wq^T
            pl.BlockSpec((E, E), rep),                         # Wk^T
            pl.BlockSpec((E, E), rep),                         # Wv^T
            pl.BlockSpec((1, E), rep),                         # bq
            pl.BlockSpec((1, E), rep),                         # bk
            pl.BlockSpec((1, E), rep),                         # bv
            pl.BlockSpec((E, E), rep),                         # Wo^T
            pl.BlockSpec((1, E), rep),                         # bo
        ],
        out_specs=pl.BlockSpec((None, L, E), lambda i: (i, 0, 0)),
        compiler_params=pltpu.CompilerParams(
            dimension_semantics=("parallel",)),   # shardable across v7x's 2 TCs
    )(q_b, k_b, v_b, wq_t, wk_t, wv_t, bq, bk, bv, wo_t, bo)

    # TODO(synk): for realistic L/S, add an S ("arbitrary", last) grid axis with
    # online-softmax scratch and enable use_bf16 for the matmul operands.
    return jnp.transpose(out_b, (1, 0, 2))   # back to seq-first (L, N, E)


def mha_reference(query, key, value, params, num_heads):
    """Pure-JAX reference of torch.nn.MultiheadAttention forward (no dropout)."""
    L, N, E = query.shape
    S = key.shape[0]
    H, Dh = num_heads, E // num_heads
    in_w, in_b = params["in_proj_weight"], params["in_proj_bias"]
    Q = query @ in_w[:E].T + in_b[:E]
    K = key @ in_w[E:2 * E].T + in_b[E:2 * E]
    V = value @ in_w[2 * E:].T + in_b[2 * E:]

    def split(x):
        Lx = x.shape[0]
        return x.reshape(Lx, N, H, Dh).transpose(1, 2, 0, 3)  # (N, H, Lx, Dh)

    Qh, Kh, Vh = split(Q), split(K), split(V)
    s = jnp.einsum("nhld,nhsd->nhls", Qh, Kh) / math.sqrt(Dh)
    p = jax.nn.softmax(s, axis=-1)
    o = jnp.einsum("nhls,nhsd->nhld", p, Vh)             # (N, H, L, Dh)
    o = o.transpose(2, 0, 1, 3).reshape(L, N, E)
    return o @ params["out_proj_weight"].T + params["out_proj_bias"]


def init_params(rng, embed_size):
    """Deterministic, PyTorch-style init (xavier-uniform in_proj, zero biases)."""
    k1, k2 = jax.random.split(rng)
    bound_in = math.sqrt(6.0 / (embed_size + embed_size))
    in_proj_weight = jax.random.uniform(
        k1, (3 * embed_size, embed_size), jnp.float32, -bound_in, bound_in)
    in_proj_bias = jnp.zeros((3 * embed_size,), jnp.float32)
    bound_out = 1.0 / math.sqrt(embed_size)
    out_proj_weight = jax.random.uniform(
        k2, (embed_size, embed_size), jnp.float32, -bound_out, bound_out)
    out_proj_bias = jnp.zeros((embed_size,), jnp.float32)
    return {
        "in_proj_weight": in_proj_weight,
        "in_proj_bias": in_proj_bias,
        "out_proj_weight": out_proj_weight,
        "out_proj_bias": out_proj_bias,
    }


if __name__ == "__main__":
    embed_size = 32
    num_heads = 4
    L = 8   # target sequence length
    S = 8   # source sequence length
    N = 2   # batch

    root = jax.random.PRNGKey(0)
    kq, kv, kk, kp = jax.random.split(root, 4)

    # PyTorch seq-first layout (L, N, E) / (S, N, E)
    query = jax.random.normal(kq, (L, N, embed_size), jnp.float32)
    value = jax.random.normal(kv, (S, N, embed_size), jnp.float32)
    key = jax.random.normal(kk, (S, N, embed_size), jnp.float32)

    params = init_params(kp, embed_size)

    out = attn_forward(query, value, key, params, num_heads)
    out = jax.block_until_ready(out)

    ref = mha_reference(query, key, value, params, num_heads)
    assert out.shape == (L, N, embed_size)
    # Tolerance 1e-4 accounts for the EUP approx reciprocal (+ Newton refinement)
    # used for the softmax normalization.
    assert jnp.allclose(out, ref, atol=1e-4, rtol=1e-4), \
        f"max abs err = {jnp.max(jnp.abs(out - ref))}"

    print("KERNEL_OK")
</pallas_src>

<mosaic_0001>
module attributes {stable_mosaic.version = 11 : i64} {
  func.func @_mha_kernel(%arg0: i32, %arg1: memref<1x8x32xf32, #tpu.memory_space<vmem>>, %arg2: memref<1x8x32xf32, #tpu.memory_space<vmem>>, %arg3: memref<1x8x32xf32, #tpu.memory_space<vmem>>, %arg4: memref<32x32xf32, #tpu.memory_space<vmem>>, %arg5: memref<32x32xf32, #tpu.memory_space<vmem>>, %arg6: memref<32x32xf32, #tpu.memory_space<vmem>>, %arg7: memref<1x32xf32, #tpu.memory_space<vmem>>, %arg8: memref<1x32xf32, #tpu.memory_space<vmem>>, %arg9: memref<1x32xf32, #tpu.memory_space<vmem>>, %arg10: memref<32x32xf32, #tpu.memory_space<vmem>>, %arg11: memref<1x32xf32, #tpu.memory_space<vmem>>, %arg12: memref<1x8x32xf32, #tpu.memory_space<vmem>>) attributes {dimension_semantics = [#tpu.dimension_semantics<parallel>], iteration_bounds = array<i64: 2>, scalar_prefetch = 0 : i64, scratch_operands = 0 : i64, tpu.core_type = #tpu.core_type<tc>, window_params = [{transform_indices = @transform_0, window_bounds = array<i64: 1, 8, 32>}, {transform_indices = @transform_1, window_bounds = array<i64: 1, 8, 32>}, {transform_indices = @transform_2, window_bounds = array<i64: 1, 8, 32>}, {pipeline_mode = #tpu.pipeline_mode<synchronous>, transform_indices = @transform_3, window_bounds = array<i64: 32, 32>}, {pipeline_mode = #tpu.pipeline_mode<synchronous>, transform_indices = @transform_4, window_bounds = array<i64: 32, 32>}, {pipeline_mode = #tpu.pipeline_mode<synchronous>, transform_indices = @transform_5, window_bounds = array<i64: 32, 32>}, {pipeline_mode = #tpu.pipeline_mode<synchronous>, transform_indices = @transform_6, window_bounds = array<i64: 1, 32>}, {pipeline_mode = #tpu.pipeline_mode<synchronous>, transform_indices = @transform_7, window_bounds = array<i64: 1, 32>}, {pipeline_mode = #tpu.pipeline_mode<synchronous>, transform_indices = @transform_8, window_bounds = array<i64: 1, 32>}, {pipeline_mode = #tpu.pipeline_mode<synchronous>, transform_indices = @transform_9, window_bounds = array<i64: 32, 32>}, {pipeline_mode = #tpu.pipeline_mode<synchronous>, transform_indices = @transform_10, window_bounds = array<i64: 1, 32>}, {transform_indices = @transform_11, window_bounds = array<i64: 1, 8, 32>}]} {
    %c0 = arith.constant 0 : index
    %c0_0 = arith.constant 0 : index
    %c0_1 = arith.constant 0 : index
    %0 = vector.load %arg1[%c0, %c0_0, %c0_1] : memref<1x8x32xf32, #tpu.memory_space<vmem>>, vector<1x8x32xf32>
    %1 = vector.shape_cast %0 : vector<1x8x32xf32> to vector<8x32xf32>
    %c0_2 = arith.constant 0 : index
    %c0_3 = arith.constant 0 : index
    %2 = vector.load %arg4[%c0_2, %c0_3] : memref<32x32xf32, #tpu.memory_space<vmem>>, vector<32x32xf32>
    %cst = arith.constant dense<0.000000e+00> : vector<8x32xf32>
    %3 = tpu.matmul %1, %2, %cst {dimension_numbers = #tpu.dot_dimension_numbers<[1], [0], [0], [1], [0, 0, 1, 1], [], []>} : vector<8x32xf32>, vector<32x32xf32>, vector<8x32xf32> -> vector<8x32xf32>
    %c0_4 = arith.constant 0 : index
    %c0_5 = arith.constant 0 : index
    %4 = vector.load %arg7[%c0_4, %c0_5] : memref<1x32xf32, #tpu.memory_space<vmem>>, vector<1x32xf32>
    %5 = vector.broadcast %4 : vector<1x32xf32> to vector<8x32xf32>
    %6 = arith.addf %3, %5 : vector<8x32xf32>
    %c0_6 = arith.constant 0 : index
    %c0_7 = arith.constant 0 : index
    %c0_8 = arith.constant 0 : index
    %7 = vector.load %arg2[%c0_6, %c0_7, %c0_8] : memref<1x8x32xf32, #tpu.memory_space<vmem>>, vector<1x8x32xf32>
    %8 = vector.shape_cast %7 : vector<1x8x32xf32> to vector<8x32xf32>
    %c0_9 = arith.constant 0 : index
    %c0_10 = arith.constant 0 : index
    %9 = vector.load %arg5[%c0_9, %c0_10] : memref<32x32xf32, #tpu.memory_space<vmem>>, vector<32x32xf32>
    %cst_11 = arith.constant dense<0.000000e+00> : vector<8x32xf32>
    %10 = tpu.matmul %8, %9, %cst_11 {dimension_numbers = #tpu.dot_dimension_numbers<[1], [0], [0], [1], [0, 0, 1, 1], [], []>} : vector<8x32xf32>, vector<32x32xf32>, vector<8x32xf32> -> vector<8x32xf32>
    %c0_12 = arith.constant 0 : index
    %c0_13 = arith.constant 0 : index
    %11 = vector.load %arg8[%c0_12, %c0_13] : memref<1x32xf32, #tpu.memory_space<vmem>>, vector<1x32xf32>
    %12 = vector.broadcast %11 : vector<1x32xf32> to vector<8x32xf32>
    %13 = arith.addf %10, %12 : vector<8x32xf32>
    %c0_14 = arith.constant 0 : index
    %c0_15 = arith.constant 0 : index
    %c0_16 = arith.constant 0 : index
    %14 = vector.load %arg3[%c0_14, %c0_15, %c0_16] : memref<1x8x32xf32, #tpu.memory_space<vmem>>, vector<1x8x32xf32>
    %15 = vector.shape_cast %14 : vector<1x8x32xf32> to vector<8x32xf32>
    %c0_17 = arith.constant 0 : index
    %c0_18 = arith.constant 0 : index
    %16 = vector.load %arg6[%c0_17, %c0_18] : memref<32x32xf32, #tpu.memory_space<vmem>>, vector<32x32xf32>
    %cst_19 = arith.constant dense<0.000000e+00> : vector<8x32xf32>
    %17 = tpu.matmul %15, %16, %cst_19 {dimension_numbers = #tpu.dot_dimension_numbers<[1], [0], [0], [1], [0, 0, 1, 1], [], []>} : vector<8x32xf32>, vector<32x32xf32>, vector<8x32xf32> -> vector<8x32xf32>
    %c0_20 = arith.constant 0 : index
    %c0_21 = arith.constant 0 : index
    %18 = vector.load %arg9[%c0_20, %c0_21] : memref<1x32xf32, #tpu.memory_space<vmem>>, vector<1x32xf32>
    %19 = vector.broadcast %18 : vector<1x32xf32> to vector<8x32xf32>
    %20 = arith.addf %17, %19 : vector<8x32xf32>
    %cst_22 = arith.constant 0.353553385 : f32
    %21 = vector.broadcast %cst_22 : f32 to vector<8x32xf32>
    %22 = arith.mulf %6, %21 : vector<8x32xf32>
    %23 = vector.extract_strided_slice %22 {offsets = [0, 0], sizes = [8, 8], strides = [1, 1]} : vector<8x32xf32> to vector<8x8xf32>
    %24 = vector.extract_strided_slice %13 {offsets = [0, 0], sizes = [8, 8], strides = [1, 1]} : vector<8x32xf32> to vector<8x8xf32>
    %cst_23 = arith.constant dense<0.000000e+00> : vector<8x8xf32>
    %25 = tpu.matmul %23, %24, %cst_23 {dimension_numbers = #tpu.dot_dimension_numbers<[1], [1], [0], [0], [0, 0, 1, 0], [], []>} : vector<8x8xf32>, vector<8x8xf32>, vector<8x8xf32> -> vector<8x8xf32>
    %26 = vector.extract_strided_slice %22 {offsets = [0, 8], sizes = [8, 8], strides = [1, 1]} : vector<8x32xf32> to vector<8x8xf32>
    %27 = vector.extract_strided_slice %13 {offsets = [0, 8], sizes = [8, 8], strides = [1, 1]} : vector<8x32xf32> to vector<8x8xf32>
    %cst_24 = arith.constant dense<0.000000e+00> : vector<8x8xf32>
    %28 = tpu.matmul %26, %27, %cst_24 {dimension_numbers = #tpu.dot_dimension_numbers<[1], [1], [0], [0], [0, 0, 1, 0], [], []>} : vector<8x8xf32>, vector<8x8xf32>, vector<8x8xf32> -> vector<8x8xf32>
    %29 = vector.extract_strided_slice %22 {offsets = [0, 16], sizes = [8, 8], strides = [1, 1]} : vector<8x32xf32> to vector<8x8xf32>
    %30 = vector.extract_strided_slice %13 {offsets = [0, 16], sizes = [8, 8], strides = [1, 1]} : vector<8x32xf32> to vector<8x8xf32>
    %cst_25 = arith.constant dense<0.000000e+00> : vector<8x8xf32>
    %31 = tpu.matmul %29, %30, %cst_25 {dimension_numbers = #tpu.dot_dimension_numbers<[1], [1], [0], [0], [0, 0, 1, 0], [], []>} : vector<8x8xf32>, vector<8x8xf32>, vector<8x8xf32> -> vector<8x8xf32>
    %32 = vector.extract_strided_slice %22 {offsets = [0, 24], sizes = [8, 8], strides = [1, 1]} : vector<8x32xf32> to vector<8x8xf32>
    %33 = vector.extract_strided_slice %13 {offsets = [0, 24], sizes = [8, 8], strides = [1, 1]} : vector<8x32xf32> to vector<8x8xf32>
    %cst_26 = arith.constant dense<0.000000e+00> : vector<8x8xf32>
    %34 = tpu.matmul %32, %33, %cst_26 {dimension_numbers = #tpu.dot_dimension_numbers<[1], [1], [0], [0], [0, 0, 1, 0], [], []>} : vector<8x8xf32>, vector<8x8xf32>, vector<8x8xf32> -> vector<8x8xf32>
    %35 = tpu.concatenate %25, %28, %31, %34 in 0 : vector<8x8xf32>, vector<8x8xf32>, vector<8x8xf32>, vector<8x8xf32> -> vector<32x8xf32>
    %cst_27 = arith.constant dense<0xFF800000> : vector<32xf32>
    %36 = vector.multi_reduction <maximumf>, %35, %cst_27 [1] : vector<32x8xf32> to vector<32xf32>
    %37 = vector.shape_cast %36 : vector<32xf32> to vector<32x1xf32>
    %38 = vector.broadcast %37 : vector<32x1xf32> to vector<32x8xf32>
    %39 = arith.subf %35, %38 : vector<32x8xf32>
    %40 = math.exp %39 : vector<32x8xf32>
    %cst_28 = arith.constant dense<0.000000e+00> : vector<32xf32>
    %41 = vector.multi_reduction <add>, %40, %cst_28 [1] : vector<32x8xf32> to vector<32xf32>
    %42 = vector.shape_cast %41 : vector<32xf32> to vector<32x1xf32>
    %43 = tpu.reciprocal %42 {approx = true} : vector<32x1xf32> -> vector<32x1xf32>
    %44 = arith.mulf %42, %43 : vector<32x1xf32>
    %cst_29 = arith.constant 2.000000e+00 : f32
    %45 = vector.broadcast %cst_29 : f32 to vector<32x1xf32>
    %46 = arith.subf %45, %44 : vector<32x1xf32>
    %47 = arith.mulf %43, %46 : vector<32x1xf32>
    %48 = vector.extract_strided_slice %40 {offsets = [0, 0], sizes = [8, 8], strides = [1, 1]} : vector<32x8xf32> to vector<8x8xf32>
    %49 = vector.extract_strided_slice %20 {offsets = [0, 0], sizes = [8, 8], strides = [1, 1]} : vector<8x32xf32> to vector<8x8xf32>
    %50 = vector.extract_strided_slice %47 {offsets = [0, 0], sizes = [8, 1], strides = [1, 1]} : vector<32x1xf32> to vector<8x1xf32>
    %cst_30 = arith.constant dense<0.000000e+00> : vector<8x8xf32>
    %51 = tpu.matmul %48, %49, %cst_30 {dimension_numbers = #tpu.dot_dimension_numbers<[1], [0], [0], [1], [0, 0, 1, 1], [], []>} : vector<8x8xf32>, vector<8x8xf32>, vector<8x8xf32> -> vector<8x8xf32>
    %52 = vector.broadcast %50 : vector<8x1xf32> to vector<8x8xf32>
    %53 = arith.mulf %51, %52 : vector<8x8xf32>
    %54 = vector.extract_strided_slice %40 {offsets = [8, 0], sizes = [8, 8], strides = [1, 1]} : vector<32x8xf32> to vector<8x8xf32>
    %55 = vector.extract_strided_slice %20 {offsets = [0, 8], sizes = [8, 8], strides = [1, 1]} : vector<8x32xf32> to vector<8x8xf32>
    %56 = vector.extract_strided_slice %47 {offsets = [8, 0], sizes = [8, 1], strides = [1, 1]} : vector<32x1xf32> to vector<8x1xf32>
    %cst_31 = arith.constant dense<0.000000e+00> : vector<8x8xf32>
    %57 = tpu.matmul %54, %55, %cst_31 {dimension_numbers = #tpu.dot_dimension_numbers<[1], [0], [0], [1], [0, 0, 1, 1], [], []>} : vector<8x8xf32>, vector<8x8xf32>, vector<8x8xf32> -> vector<8x8xf32>
    %58 = vector.broadcast %56 : vector<8x1xf32> to vector<8x8xf32>
    %59 = arith.mulf %57, %58 : vector<8x8xf32>
    %60 = vector.extract_strided_slice %40 {offsets = [16, 0], sizes = [8, 8], strides = [1, 1]} : vector<32x8xf32> to vector<8x8xf32>
    %61 = vector.extract_strided_slice %20 {offsets = [0, 16], sizes = [8, 8], strides = [1, 1]} : vector<8x32xf32> to vector<8x8xf32>
    %62 = vector.extract_strided_slice %47 {offsets = [16, 0], sizes = [8, 1], strides = [1, 1]} : vector<32x1xf32> to vector<8x1xf32>
    %cst_32 = arith.constant dense<0.000000e+00> : vector<8x8xf32>
    %63 = tpu.matmul %60, %61, %cst_32 {dimension_numbers = #tpu.dot_dimension_numbers<[1], [0], [0], [1], [0, 0, 1, 1], [], []>} : vector<8x8xf32>, vector<8x8xf32>, vector<8x8xf32> -> vector<8x8xf32>
    %64 = vector.broadcast %62 : vector<8x1xf32> to vector<8x8xf32>
    %65 = arith.mulf %63, %64 : vector<8x8xf32>
    %66 = vector.extract_strided_slice %40 {offsets = [24, 0], sizes = [8, 8], strides = [1, 1]} : vector<32x8xf32> to vector<8x8xf32>
    %67 = vector.extract_strided_slice %20 {offsets = [0, 24], sizes = [8, 8], strides = [1, 1]} : vector<8x32xf32> to vector<8x8xf32>
    %68 = vector.extract_strided_slice %47 {offsets = [24, 0], sizes = [8, 1], strides = [1, 1]} : vector<32x1xf32> to vector<8x1xf32>
    %cst_33 = arith.constant dense<0.000000e+00> : vector<8x8xf32>
    %69 = tpu.matmul %66, %67, %cst_33 {dimension_numbers = #tpu.dot_dimension_numbers<[1], [0], [0], [1], [0, 0, 1, 1], [], []>} : vector<8x8xf32>, vector<8x8xf32>, vector<8x8xf32> -> vector<8x8xf32>
    %70 = vector.broadcast %68 : vector<8x1xf32> to vector<8x8xf32>
    %71 = arith.mulf %69, %70 : vector<8x8xf32>
    %72 = tpu.concatenate %53, %59, %65, %71 in 1 : vector<8x8xf32>, vector<8x8xf32>, vector<8x8xf32>, vector<8x8xf32> -> vector<8x32xf32>
    %c0_34 = arith.constant 0 : index
    %c0_35 = arith.constant 0 : index
    %73 = vector.load %arg10[%c0_34, %c0_35] : memref<32x32xf32, #tpu.memory_space<vmem>>, vector<32x32xf32>
    %cst_36 = arith.constant dense<0.000000e+00> : vector<8x32xf32>
    %74 = tpu.matmul %72, %73, %cst_36 {dimension_numbers = #tpu.dot_dimension_numbers<[1], [0], [0], [1], [0, 0, 1, 1], [], []>} : vector<8x32xf32>, vector<32x32xf32>, vector<8x32xf32> -> vector<8x32xf32>
    %c0_37 = arith.constant 0 : index
    %c0_38 = arith.constant 0 : index
    %75 = vector.load %arg11[%c0_37, %c0_38] : memref<1x32xf32, #tpu.memory_space<vmem>>, vector<1x32xf32>
    %76 = vector.broadcast %75 : vector<1x32xf32> to vector<8x32xf32>
    %77 = arith.addf %74, %76 : vector<8x32xf32>
    %c0_39 = arith.constant 0 : index
    %c0_40 = arith.constant 0 : index
    %c0_41 = arith.constant 0 : index
    %78 = vector.load %arg12[%c0_39, %c0_40, %c0_41] : memref<1x8x32xf32, #tpu.memory_space<vmem>>, vector<1x8x32xf32>
    %79 = vector.shape_cast %78 : vector<1x8x32xf32> to vector<8x32xf32>
    %80 = vector.shape_cast %77 : vector<8x32xf32> to vector<1x8x32xf32>
    tpu.vector_store %arg12[%c0_39, %c0_40, %c0_41], %80 {strides = array<i32>} : memref<1x8x32xf32, #tpu.memory_space<vmem>>, vector<1x8x32xf32>,
    return
  }
  func.func @transform_0(%arg0: i32) -> (i32, i32, i32) {
    %c0_i32 = arith.constant 0 : i32
    %c0_i32_0 = arith.constant 0 : i32
    %c0_i32_1 = arith.constant 0 : i32
    return %arg0, %c0_i32, %c0_i32_0 : i32, i32, i32
  }
  func.func @transform_1(%arg0: i32) -> (i32, i32, i32) {
    %c0_i32 = arith.constant 0 : i32
    %c0_i32_0 = arith.constant 0 : i32
    %c0_i32_1 = arith.constant 0 : i32
    return %arg0, %c0_i32, %c0_i32_0 : i32, i32, i32
  }
  func.func @transform_2(%arg0: i32) -> (i32, i32, i32) {
    %c0_i32 = arith.constant 0 : i32
    %c0_i32_0 = arith.constant 0 : i32
    %c0_i32_1 = arith.constant 0 : i32
    return %arg0, %c0_i32, %c0_i32_0 : i32, i32, i32
  }
  func.func @transform_3(%arg0: i32) -> (i32, i32) {
    %c0_i32 = arith.constant 0 : i32
    %c0_i32_0 = arith.constant 0 : i32
    %c0_i32_1 = arith.constant 0 : i32
    return %c0_i32, %c0_i32_0 : i32, i32
  }
  func.func @transform_4(%arg0: i32) -> (i32, i32) {
    %c0_i32 = arith.constant 0 : i32
    %c0_i32_0 = arith.constant 0 : i32
    %c0_i32_1 = arith.constant 0 : i32
    return %c0_i32, %c0_i32_0 : i32, i32
  }
  func.func @transform_5(%arg0: i32) -> (i32, i32) {
    %c0_i32 = arith.constant 0 : i32
    %c0_i32_0 = arith.constant 0 : i32
    %c0_i32_1 = arith.constant 0 : i32
    return %c0_i32, %c0_i32_0 : i32, i32
  }
  func.func @transform_6(%arg0: i32) -> (i32, i32) {
    %c0_i32 = arith.constant 0 : i32
    %c0_i32_0 = arith.constant 0 : i32
    %c0_i32_1 = arith.constant 0 : i32
    return %c0_i32, %c0_i32_0 : i32, i32
  }
  func.func @transform_7(%arg0: i32) -> (i32, i32) {
    %c0_i32 = arith.constant 0 : i32
    %c0_i32_0 = arith.constant 0 : i32
    %c0_i32_1 = arith.constant 0 : i32
    return %c0_i32, %c0_i32_0 : i32, i32
  }
  func.func @transform_8(%arg0: i32) -> (i32, i32) {
    %c0_i32 = arith.constant 0 : i32
    %c0_i32_0 = arith.constant 0 : i32
    %c0_i32_1 = arith.constant 0 : i32
    return %c0_i32, %c0_i32_0 : i32, i32
  }
  func.func @transform_9(%arg0: i32) -> (i32, i32) {
    %c0_i32 = arith.constant 0 : i32
    %c0_i32_0 = arith.constant 0 : i32
    %c0_i32_1 = arith.constant 0 : i32
    return %c0_i32, %c0_i32_0 : i32, i32
  }
  func.func @transform_10(%arg0: i32) -> (i32, i32) {
    %c0_i32 = arith.constant 0 : i32
    %c0_i32_0 = arith.constant 0 : i32
    %c0_i32_1 = arith.constant 0 : i32
    return %c0_i32, %c0_i32_0 : i32, i32
  }
  func.func @transform_11(%arg0: i32) -> (i32, i32, i32) {
    %c0_i32 = arith.constant 0 : i32
    %c0_i32_0 = arith.constant 0 : i32
    %c0_i32_1 = arith.constant 0 : i32
    return %arg0, %c0_i32, %c0_i32_0 : i32, i32, i32
  }
}

</mosaic_0001>

<llo_original>
// kernel: tpu_custom_call.1
$region0: #{tpu_custom_call.1}
  #allocation0 [shape = 'u32[]', space=smem, size = 0x4, offset = 0x4, fixed_abs, tag = 'smem constant byte address 0x4 - core index']
  #allocation1 [shape = 'u32[144,128]{1,0:T(1,128)}', space=vmem, size = 0x12000, scoped, tag = 'internal scratch']
  %s0 = inlined_call_operand.hbm [shape: f32[2,8,32], index: 0, kind: input, shape index: {}]
  %s1 = inlined_call_operand.hbm [shape: f32[2,8,32], index: 1, kind: input, shape index: {}]
  %s2 = inlined_call_operand.hbm [shape: f32[2,8,32], index: 2, kind: input, shape index: {}]
  %s3 = inlined_call_operand.hbm [shape: f32[32,32], index: 3, kind: input, shape index: {}]
  %s4 = inlined_call_operand.hbm [shape: f32[32,32], index: 4, kind: input, shape index: {}]
  %s5 = inlined_call_operand.hbm [shape: f32[32,32], index: 5, kind: input, shape index: {}]
  %s6 = inlined_call_operand.vmem [shape: f32[1,32], index: 6, kind: input, shape index: {}]
  %s7 = inlined_call_operand.vmem [shape: f32[1,32], index: 7, kind: input, shape index: {}]
  %s8 = inlined_call_operand.hbm [shape: f32[1,32], index: 8, kind: input, shape index: {}]
  %s9 = inlined_call_operand.vmem [shape: f32[32,32], index: 9, kind: input, shape index: {}]
  %s10 = inlined_call_operand.vmem [shape: f32[1,32], index: 10, kind: input, shape index: {}]
  %s11 = inlined_call_operand.hbm [shape: f32[2,8,32], index: 11, kind: output, shape index: {}]
  %s12 = sld [smem:[#allocation0]]
  $region105: #{tpu_custom_call.1} parent=0
    _
  %s14 = ssub.s32 1, %s12
  %s15 = scalar_select 0, %s14, %s12
  $region1: #{tpu_custom_call.1} parent=0
    #allocation2 [shape = 'u8[8192]{0}', space=vmem, size = 0x2000, scoped, tag = 'input window, operand 0']
    #allocation3 [shape = 's32[2]{0}', space=sflag, size = 0x8, scoped, tag = 'scoped memory for tpu_custom_call.1']
    #allocation4 [shape = 's32[2]{0}', space=sflag, size = 0x8, scoped, tag = 'scoped memory for tpu_custom_call.1']
    #allocation5 [shape = 'u8[8192]{0}', space=vmem, size = 0x2000, scoped, tag = 'input window, operand 1']
    #allocation6 [shape = 's32[2]{0}', space=sflag, size = 0x8, scoped, tag = 'scoped memory for tpu_custom_call.1']
    #allocation7 [shape = 'u8[8192]{0}', space=vmem, size = 0x2000, scoped, tag = 'input window, operand 2']
    #allocation8 [shape = 'u8[16384]{0}', space=vmem, size = 0x4000, scoped, tag = 'input window, operand 3, single buffered']
    #allocation9 [shape = 's32[1]{0}', space=sflag, size = 0x4, scoped, tag = 'scoped memory for tpu_custom_call.1']
    #allocation10 [shape = 'u8[16384]{0}', space=vmem, size = 0x4000, scoped, tag = 'input window, operand 4, single buffered']
    #allocation11 [shape = 'u8[16384]{0}', space=vmem, size = 0x4000, scoped, tag = 'input window, operand 5, single buffered']
    #allocation12 [shape = 's32[1]{0}', space=sflag, size = 0x4, scoped, tag = 'scoped memory for tpu_custom_call.1']
    #allocation13 [shape = 'u8[512]{0}', space=vmem, size = 0x400, scoped, tag = 'input window, operand 8, single buffered']
    #allocation14 [shape = 'u8[8192]{0}', space=vmem, size = 0x2000, scoped, tag = 'output window, operand 0']
    %16 = vsyncpa [#allocation3], 0
    %s17 = scalar_lea.sflag [#allocation3], 1
    %18 = vsyncpa %s17, 0
    %19 = vsyncpa [#allocation6], 0
    %s20 = scalar_lea.sflag [#allocation6], 1
    %21 = vsyncpa %s20, 0
    %22 = vsyncpa [#allocation9], 0
    %23 = vsyncpa [#allocation12], 0
    %24 = vsyncpa [#allocation4], 0
    %s25 = scalar_lea.sflag [#allocation4], 1
    %26 = vsyncpa %s25, 0
    loop: start=0, step=1, limit=4
    $region2: #{tpu_custom_call.1} parent=1 // loop_pre_header
      _
    $region3: #{tpu_custom_call.1} parent=1 // loop_header
      %s28 = sphi 0, %s32
      %p29 = scmp.ge.s32.totalorder %s28, 4
      %s38 = sphi 0, %s40
      %s41 = sphi 0, %s38
      %s42 = sphi 0, %s41
      %s58 = sphi 0, %s42
      %s64 = sphi 0, %s66
      %s67 = sphi 0, %s64
      %s68 = sphi 0, %s67
      %s84 = sphi 0, %s68
      %s90 = sphi 0, %s92
      %s93 = sphi 0, %s90
      %s94 = sphi 0, %s93
      %s110 = sphi 0, %s94
      %s114 = sphi 0, %s114
      %s116 = sphi 0, %s114
      %s117 = sphi 0, %s116
      %s131 = sphi 0, %s117
      %s135 = sphi 0, %s135
      %s137 = sphi 0, %s135
      %s138 = sphi 0, %s137
      %s152 = sphi 0, %s138
      %s156 = sphi 0, %s156
      %s158 = sphi 0, %s156
      %s159 = sphi 0, %s158
      %s173 = sphi 0, %s159
      %s177 = sphi 0, %s177
      %s179 = sphi 0, %s177
      %s180 = sphi 0, %s179
      %s194 = sphi 0, %s180
      %s198 = sphi 0, %s198
      %s200 = sphi 0, %s198
      %s201 = sphi 0, %s200
      %s215 = sphi 0, %s201
      %s219 = sphi 0, %s219
      %s221 = sphi 0, %s219
      %s222 = sphi 0, %s221
      %s236 = sphi 0, %s222
      %s240 = sphi 0, %s240
      %s242 = sphi 0, %s240
      %s243 = sphi 0, %s242
      %s257 = sphi 0, %s243
      %s261 = sphi 0, %s261
      %s263 = sphi 0, %s261
      %s264 = sphi 0, %s263
      %s278 = sphi 0, %s264
      %s284 = sphi 0, %s286
      %s287 = sphi 0, %s284
      %s288 = sphi 0, %s287
      %s304 = sphi 0, %s288
    $region4: #{tpu_custom_call.1} parent=1 // loop_header_branch
      %31 = sbr.rel (%p29) target = $region8
    $region5: #{tpu_custom_call.1} parent=1 // loop_body
      %s33 = ssub.s32 %s28, 1
      %s34 = ssub.s32 %s28, 2
      %s35 = sadd.s32 %s28, 1
      %s36 = ssub.s32 %s28, %s35
      %p37 = scmp.eq.s32.totalorder %s36, 0
      %s39 = sadd.s32 %s38, 1
      %s40 = scalar_select %p37, %s38, %s39
      %p43 = pneg %p37
      %p44 = scmp.eq.s32.totalorder %s28, 1
      %p45 = por %p43, %p44
      %p46 = scmp.ne.s32.totalorder %s38, %s41
      %p47 = scmp.eq.s32.totalorder %s28, 0
      %p48 = por %p46, %p47
      %p49 = scmp.ne.s32.totalorder %s38, %s41
      %p50 = scmp.eq.s32.totalorder %s33, 1
      %p51 = por %p49, %p50
      %p52 = scmp.ne.s32.totalorder %s41, %s42
      %p53 = scmp.eq.s32.totalorder %s33, 0
      %p54 = por %p52, %p53
      %p55 = scmp.ne.s32.totalorder %s41, %s42
      %p56 = scmp.eq.s32.totalorder %s34, 1
      %p57 = por %p55, %p56
      %p59 = scmp.ne.s32.totalorder %s42, %s58
      %p60 = scmp.eq.s32.totalorder %s34, 0
      %p61 = por %p59, %p60
      %s62 = ssub.s32 %s28, %s35
      %p63 = scmp.eq.s32.totalorder %s62, 0
      %s65 = sadd.s32 %s64, 1
      %s66 = scalar_select %p63, %s64, %s65
      %p69 = pneg %p63
      %p70 = scmp.eq.s32.totalorder %s28, 1
      %p71 = por %p69, %p70
      %p72 = scmp.ne.s32.totalorder %s64, %s67
      %p73 = scmp.eq.s32.totalorder %s28, 0
      %p74 = por %p72, %p73
      %p75 = scmp.ne.s32.totalorder %s64, %s67
      %p76 = scmp.eq.s32.totalorder %s33, 1
      %p77 = por %p75, %p76
      %p78 = scmp.ne.s32.totalorder %s67, %s68
      %p79 = scmp.eq.s32.totalorder %s33, 0
      %p80 = por %p78, %p79
      %p81 = scmp.ne.s32.totalorder %s67, %s68
      %p82 = scmp.eq.s32.totalorder %s34, 1
      %p83 = por %p81, %p82
      %p85 = scmp.ne.s32.totalorder %s68, %s84
      %p86 = scmp.eq.s32.totalorder %s34, 0
      %p87 = por %p85, %p86
      %s88 = ssub.s32 %s28, %s35
      %p89 = scmp.eq.s32.totalorder %s88, 0
      %s91 = sadd.s32 %s90, 1
      %s92 = scalar_select %p89, %s90, %s91
      %p95 = pneg %p89
      %p96 = scmp.eq.s32.totalorder %s28, 1
      %p97 = por %p95, %p96
      %p98 = scmp.ne.s32.totalorder %s90, %s93
      %p99 = scmp.eq.s32.totalorder %s28, 0
      %p100 = por %p98, %p99
      %p101 = scmp.ne.s32.totalorder %s90, %s93
      %p102 = scmp.eq.s32.totalorder %s33, 1
      %p103 = por %p101, %p102
      %p104 = scmp.ne.s32.totalorder %s93, %s94
      %p105 = scmp.eq.s32.totalorder %s33, 0
      %p106 = por %p104, %p105
      %p107 = scmp.ne.s32.totalorder %s93, %s94
      %p108 = scmp.eq.s32.totalorder %s34, 1
      %p109 = por %p107, %p108
      %p111 = scmp.ne.s32.totalorder %s94, %s110
      %p112 = scmp.eq.s32.totalorder %s34, 0
      %p113 = por %p111, %p112
      %s115 = sadd.s32 %s114, 1
      %p118 = scmp.eq.s32.totalorder %s28, 1
      %p119 = scmp.ne.s32.totalorder %s114, %s116
      %p120 = scmp.eq.s32.totalorder %s28, 0
      %p121 = por %p119, %p120
      %p122 = scmp.ne.s32.totalorder %s114, %s116
      %p123 = scmp.eq.s32.totalorder %s33, 1
      %p124 = por %p122, %p123
      %p125 = scmp.ne.s32.totalorder %s116, %s117
      %p126 = scmp.eq.s32.totalorder %s33, 0
      %p127 = por %p125, %p126
      %p128 = scmp.ne.s32.totalorder %s116, %s117
      %p129 = scmp.eq.s32.totalorder %s34, 1
      %p130 = por %p128, %p129
      %p132 = scmp.ne.s32.totalorder %s117, %s131
      %p133 = scmp.eq.s32.totalorder %s34, 0
      %p134 = por %p132, %p133
      %s136 = sadd.s32 %s135, 1
      %p139 = scmp.eq.s32.totalorder %s28, 1
      %p140 = scmp.ne.s32.totalorder %s135, %s137
      %p141 = scmp.eq.s32.totalorder %s28, 0
      %p142 = por %p140, %p141
      %p143 = scmp.ne.s32.totalorder %s135, %s137
      %p144 = scmp.eq.s32.totalorder %s33, 1
      %p145 = por %p143, %p144
      %p146 = scmp.ne.s32.totalorder %s137, %s138
      %p147 = scmp.eq.s32.totalorder %s33, 0
      %p148 = por %p146, %p147
      %p149 = scmp.ne.s32.totalorder %s137, %s138
      %p150 = scmp.eq.s32.totalorder %s34, 1
      %p151 = por %p149, %p150
      %p153 = scmp.ne.s32.totalorder %s138, %s152
      %p154 = scmp.eq.s32.totalorder %s34, 0
      %p155 = por %p153, %p154
      %s157 = sadd.s32 %s156, 1
      %p160 = scmp.eq.s32.totalorder %s28, 1
      %p161 = scmp.ne.s32.totalorder %s156, %s158
      %p162 = scmp.eq.s32.totalorder %s28, 0
      %p163 = por %p161, %p162
      %p164 = scmp.ne.s32.totalorder %s156, %s158
      %p165 = scmp.eq.s32.totalorder %s33, 1
      %p166 = por %p164, %p165
      %p167 = scmp.ne.s32.totalorder %s158, %s159
      %p168 = scmp.eq.s32.totalorder %s33, 0
      %p169 = por %p167, %p168
      %p170 = scmp.ne.s32.totalorder %s158, %s159
      %p171 = scmp.eq.s32.totalorder %s34, 1
      %p172 = por %p170, %p171
      %p174 = scmp.ne.s32.totalorder %s159, %s173
      %p175 = scmp.eq.s32.totalorder %s34, 0
      %p176 = por %p174, %p175
      %s178 = sadd.s32 %s177, 1
      %p181 = scmp.eq.s32.totalorder %s28, 1
      %p182 = scmp.ne.s32.totalorder %s177, %s179
      %p183 = scmp.eq.s32.totalorder %s28, 0
      %p184 = por %p182, %p183
      %p185 = scmp.ne.s32.totalorder %s177, %s179
      %p186 = scmp.eq.s32.totalorder %s33, 1
      %p187 = por %p185, %p186
      %p188 = scmp.ne.s32.totalorder %s179, %s180
      %p189 = scmp.eq.s32.totalorder %s33, 0
      %p190 = por %p188, %p189
      %p191 = scmp.ne.s32.totalorder %s179, %s180
      %p192 = scmp.eq.s32.totalorder %s34, 1
      %p193 = por %p191, %p192
      %p195 = scmp.ne.s32.totalorder %s180, %s194
      %p196 = scmp.eq.s32.totalorder %s34, 0
      %p197 = por %p195, %p196
      %s199 = sadd.s32 %s198, 1
      %p202 = scmp.eq.s32.totalorder %s28, 1
      %p203 = scmp.ne.s32.totalorder %s198, %s200
      %p204 = scmp.eq.s32.totalorder %s28, 0
      %p205 = por %p203, %p204
      %p206 = scmp.ne.s32.totalorder %s198, %s200
      %p207 = scmp.eq.s32.totalorder %s33, 1
      %p208 = por %p206, %p207
      %p209 = scmp.ne.s32.totalorder %s200, %s201
      %p210 = scmp.eq.s32.totalorder %s33, 0
      %p211 = por %p209, %p210
      %p212 = scmp.ne.s32.totalorder %s200, %s201
      %p213 = scmp.eq.s32.totalorder %s34, 1
      %p214 = por %p212, %p213
      %p216 = scmp.ne.s32.totalorder %s201, %s215
      %p217 = scmp.eq.s32.totalorder %s34, 0
      %p218 = por %p216, %p217
      %s220 = sadd.s32 %s219, 1
      %p223 = scmp.eq.s32.totalorder %s28, 1
      %p224 = scmp.ne.s32.totalorder %s219, %s221
      %p225 = scmp.eq.s32.totalorder %s28, 0
      %p226 = por %p224, %p225
      %p227 = scmp.ne.s32.totalorder %s219, %s221
      %p228 = scmp.eq.s32.totalorder %s33, 1
      %p229 = por %p227, %p228
      %p230 = scmp.ne.s32.totalorder %s221, %s222
      %p231 = scmp.eq.s32.totalorder %s33, 0
      %p232 = por %p230, %p231
      %p233 = scmp.ne.s32.totalorder %s221, %s222
      %p234 = scmp.eq.s32.totalorder %s34, 1
      %p235 = por %p233, %p234
      %p237 = scmp.ne.s32.totalorder %s222, %s236
      %p238 = scmp.eq.s32.totalorder %s34, 0
      %p239 = por %p237, %p238
      %s241 = sadd.s32 %s240, 1
      %p244 = scmp.eq.s32.totalorder %s28, 1
      %p245 = scmp.ne.s32.totalorder %s240, %s242
      %p246 = scmp.eq.s32.totalorder %s28, 0
      %p247 = por %p245, %p246
      %p248 = scmp.ne.s32.totalorder %s240, %s242
      %p249 = scmp.eq.s32.totalorder %s33, 1
      %p250 = por %p248, %p249
      %p251 = scmp.ne.s32.totalorder %s242, %s243
      %p252 = scmp.eq.s32.totalorder %s33, 0
      %p253 = por %p251, %p252
      %p254 = scmp.ne.s32.totalorder %s242, %s243
      %p255 = scmp.eq.s32.totalorder %s34, 1
      %p256 = por %p254, %p255
      %p258 = scmp.ne.s32.totalorder %s243, %s257
      %p259 = scmp.eq.s32.totalorder %s34, 0
      %p260 = por %p258, %p259
      %s262 = sadd.s32 %s261, 1
      %p265 = scmp.eq.s32.totalorder %s28, 1
      %p266 = scmp.ne.s32.totalorder %s261, %s263
      %p267 = scmp.eq.s32.totalorder %s28, 0
      %p268 = por %p266, %p267
      %p269 = scmp.ne.s32.totalorder %s261, %s263
      %p270 = scmp.eq.s32.totalorder %s33, 1
      %p271 = por %p269, %p270
      %p272 = scmp.ne.s32.totalorder %s263, %s264
      %p273 = scmp.eq.s32.totalorder %s33, 0
      %p274 = por %p272, %p273
      %p275 = scmp.ne.s32.totalorder %s263, %s264
      %p276 = scmp.eq.s32.totalorder %s34, 1
      %p277 = por %p275, %p276
      %p279 = scmp.ne.s32.totalorder %s264, %s278
      %p280 = scmp.eq.s32.totalorder %s34, 0
      %p281 = por %p279, %p280
      %s282 = ssub.s32 %s28, %s35
      %p283 = scmp.eq.s32.totalorder %s282, 0
      %s285 = sadd.s32 %s284, 1
      %s286 = scalar_select %p283, %s284, %s285
      %p289 = pneg %p283
      %p290 = scmp.eq.s32.totalorder %s28, 1
      %p291 = por %p289, %p290
      %p292 = scmp.ne.s32.totalorder %s284, %s287
      %p293 = scmp.eq.s32.totalorder %s28, 0
      %p294 = por %p292, %p293
      %p295 = scmp.ne.s32.totalorder %s284, %s287
      %p296 = scmp.eq.s32.totalorder %s33, 1
      %p297 = por %p295, %p296
      %p298 = scmp.ne.s32.totalorder %s287, %s288
      %p299 = scmp.eq.s32.totalorder %s33, 0
      %p300 = por %p298, %p299
      %p301 = scmp.ne.s32.totalorder %s287, %s288
      %p302 = scmp.eq.s32.totalorder %s34, 1
      %p303 = por %p301, %p302
      %p305 = scmp.ne.s32.totalorder %s288, %s304
      %p306 = scmp.eq.s32.totalorder %s34, 0
      %p307 = por %p305, %p306
      %p308 = scmp.le.s32.totalorder 1, %s28
      %p309 = scmp.lt.s32.totalorder %s28, 3
      %p310 = pnand %p308, %p309
      %p311 = pneg %p310
      // Predicated region
      $region9: #{tpu_custom_call.1} parent=5 // pred_check
        _
      $region10: #{tpu_custom_call.1} parent=5 // pred_check_branch
        %313 = sbr.rel (%p310) target = $region12
      $region11: #{tpu_custom_call.1} parent=5 // pred_region
        %s314 = ssub.s32 %s28, 1
        // Predicated region
        $region13: #{tpu_custom_call.1} parent=11 // pred_check
          %p315 = pneg %p127
        $region14: #{tpu_custom_call.1} parent=11 // pred_check_branch
          %317 = sbr.rel (%p315) target = $region16
        $region15: #{tpu_custom_call.1} parent=11 // pred_region
          %s319 = ssub.s32 512, 512
          %320 = vsyncadd [#allocation9], %s319
          %s321 = sshll.u32 [#allocation8], 4
          %s322 = int_to_ptr.vmem [resolvable:$true] %s321
          %327 = dma.hbm_to_vmem [thread:$0]  %s3, 512, %s322, [#allocation9], 128, 128, 8
        $region16: #{tpu_custom_call.1} parent=11 // pred_fallthru
          _
        // Predicated region
        $region17: #{tpu_custom_call.1} parent=11 // pred_check
          %p328 = pneg %p148
        $region18: #{tpu_custom_call.1} parent=11 // pred_check_branch
          %330 = sbr.rel (%p328) target = $region20
        $region19: #{tpu_custom_call.1} parent=11 // pred_region
          %s332 = ssub.s32 512, 512
          %333 = vsyncadd [#allocation9], %s332
          %s334 = sshll.u32 [#allocation10], 4
          %s335 = int_to_ptr.vmem [resolvable:$true] %s334
          %340 = dma.hbm_to_vmem [thread:$0]  %s4, 512, %s335, [#allocation9], 128, 128, 8
        $region20: #{tpu_custom_call.1} parent=11 // pred_fallthru
          _
        // Predicated region
        $region21: #{tpu_custom_call.1} parent=11 // pred_check
          %p341 = pneg %p169
        $region22: #{tpu_custom_call.1} parent=11 // pred_check_branch
          %343 = sbr.rel (%p341) target = $region24
        $region23: #{tpu_custom_call.1} parent=11 // pred_region
          %s345 = ssub.s32 512, 512
          %346 = vsyncadd [#allocation12], %s345
          %s347 = sshll.u32 [#allocation11], 4
          %s348 = int_to_ptr.vmem [resolvable:$true] %s347
          %353 = dma.hbm_to_vmem [thread:$0]  %s5, 512, %s348, [#allocation12], 128, 128, 8
        $region24: #{tpu_custom_call.1} parent=11 // pred_fallthru
          _
        // Predicated region
        $region25: #{tpu_custom_call.1} parent=11 // pred_check
          %p354 = pneg %p190
        $region26: #{tpu_custom_call.1} parent=11 // pred_check_branch
          %356 = sbr.rel (%p354) target = $region28
        $region27: #{tpu_custom_call.1} parent=11 // pred_region
          _
        $region28: #{tpu_custom_call.1} parent=11 // pred_fallthru
          _
        // Predicated region
        $region29: #{tpu_custom_call.1} parent=11 // pred_check
          %p357 = pneg %p211
        $region30: #{tpu_custom_call.1} parent=11 // pred_check_branch
          %359 = sbr.rel (%p357) target = $region32
        $region31: #{tpu_custom_call.1} parent=11 // pred_region
          _
        $region32: #{tpu_custom_call.1} parent=11 // pred_fallthru
          _
        // Predicated region
        $region33: #{tpu_custom_call.1} parent=11 // pred_check
          %p360 = pneg %p232
        $region34: #{tpu_custom_call.1} parent=11 // pred_check_branch
          %362 = sbr.rel (%p360) target = $region36
        $region35: #{tpu_custom_call.1} parent=11 // pred_region
          %s364 = ssub.s32 16, 16
          %365 = vsyncadd [#allocation12], %s364
          %s367 = sshll.u32 [#allocation13], 4
          %s368 = int_to_ptr.vmem [resolvable:$true] %s367
          %370 = dma.hbm_to_vmem [thread:$0]  %s8, 16, %s368, [#allocation12]
        $region36: #{tpu_custom_call.1} parent=11 // pred_fallthru
          _
        // Predicated region
        $region37: #{tpu_custom_call.1} parent=11 // pred_check
          %p371 = pneg %p253
        $region38: #{tpu_custom_call.1} parent=11 // pred_check_branch
          %373 = sbr.rel (%p371) target = $region40
        $region39: #{tpu_custom_call.1} parent=11 // pred_region
          _
        $region40: #{tpu_custom_call.1} parent=11 // pred_fallthru
          _
        // Predicated region
        $region41: #{tpu_custom_call.1} parent=11 // pred_check
          %p374 = pneg %p274
        $region42: #{tpu_custom_call.1} parent=11 // pred_check_branch
          %376 = sbr.rel (%p374) target = $region44
        $region43: #{tpu_custom_call.1} parent=11 // pred_region
          _
        $region44: #{tpu_custom_call.1} parent=11 // pred_fallthru
          _
      $region12: #{tpu_custom_call.1} parent=5 // pred_fallthru
        _
      %p377 = scmp.lt.s32.totalorder %s28, 2
      // Predicated region
      $region45: #{tpu_custom_call.1} parent=5 // pred_check
        %p378 = pneg %p377
      $region46: #{tpu_custom_call.1} parent=5 // pred_check_branch
        %380 = sbr.rel (%p378) target = $region48
      $region47: #{tpu_custom_call.1} parent=5 // pred_region
        // Predicated region
        $region49: #{tpu_custom_call.1} parent=47 // pred_check
          %p381 = pneg %p48
        $region50: #{tpu_custom_call.1} parent=47 // pred_check_branch
          %383 = sbr.rel (%p381) target = $region52
        $region51: #{tpu_custom_call.1} parent=47 // pred_region
          %s384 = sand.u32 %s38, 1
          %s385 = scalar_lea.sflag [#allocation3], %s384
          %s386 = sand.u32 %s38, 1
          %s387 = smul.addr %s386, 8
          %s388 = scalar_lea.vmem [#allocation2], %s387
          %s390 = ssub.s32 128, 128
          %391 = vsyncadd %s385, %s390
          %s392 = smul.addr %s28, 128
          %s393 = scalar_lea.hbm %s0, %s392
          %s395 = sshll.u32 %s388, 4
          %s396 = int_to_ptr.vmem [resolvable:$true] %s395
          %398 = dma.hbm_to_vmem [thread:$0]  %s393, 128, %s396, %s385
        $region52: #{tpu_custom_call.1} parent=47 // pred_fallthru
          _
        // Predicated region
        $region53: #{tpu_custom_call.1} parent=47 // pred_check
          %p399 = pneg %p74
        $region54: #{tpu_custom_call.1} parent=47 // pred_check_branch
          %401 = sbr.rel (%p399) target = $region56
        $region55: #{tpu_custom_call.1} parent=47 // pred_region
          %s402 = sand.u32 %s28, 1
          %s403 = scalar_lea.sflag [#allocation6], %s402
          %s404 = sand.u32 %s64, 1
          %s405 = smul.addr %s404, 8
          %s406 = scalar_lea.vmem [#allocation5], %s405
          %s408 = ssub.s32 128, 128
          %409 = vsyncadd %s403, %s408
          %s410 = smul.addr %s28, 128
          %s411 = scalar_lea.hbm %s1, %s410
          %s413 = sshll.u32 %s406, 4
          %s414 = int_to_ptr.vmem [resolvable:$true] %s413
          %416 = dma.hbm_to_vmem [thread:$0]  %s411, 128, %s414, %s403
        $region56: #{tpu_custom_call.1} parent=47 // pred_fallthru
          _
        // Predicated region
        $region57: #{tpu_custom_call.1} parent=47 // pred_check
          %p417 = pneg %p100
        $region58: #{tpu_custom_call.1} parent=47 // pred_check_branch
          %419 = sbr.rel (%p417) target = $region60
        $region59: #{tpu_custom_call.1} parent=47 // pred_region
          %s420 = sand.u32 %s28, 1
          %s421 = scalar_lea.sflag [#allocation6], %s420
          %s422 = sand.u32 %s90, 1
          %s423 = smul.addr %s422, 8
          %s424 = scalar_lea.vmem [#allocation7], %s423
          %s426 = ssub.s32 128, 128
          %427 = vsyncadd %s421, %s426
          %s428 = smul.addr %s28, 128
          %s429 = scalar_lea.hbm %s2, %s428
          %s431 = sshll.u32 %s424, 4
          %s432 = int_to_ptr.vmem [resolvable:$true] %s431
          %434 = dma.hbm_to_vmem [thread:$0]  %s429, 128, %s432, %s421
        $region60: #{tpu_custom_call.1} parent=47 // pred_fallthru
          _
      $region48: #{tpu_custom_call.1} parent=5 // pred_fallthru
        _
      %p435 = scmp.le.s32.totalorder 1, %s28
      %p436 = scmp.lt.s32.totalorder %s28, 3
      %p437 = pnand %p435, %p436
      %p438 = pneg %p437
      // Predicated region
      $region61: #{tpu_custom_call.1} parent=5 // pred_check
        _
      $region62: #{tpu_custom_call.1} parent=5 // pred_check_branch
        %440 = sbr.rel (%p437) target = $region64
      $region63: #{tpu_custom_call.1} parent=5 // pred_region
        %s441 = ssub.s32 %s28, 1
        %s442 = sand.u32 %s41, 1
        %s443 = scalar_lea.sflag [#allocation3], %s442
        %s444 = sand.u32 %s41, 1
        %s445 = smul.addr %s444, 8
        %s446 = scalar_lea.vmem [#allocation2], %s445
        // Predicated region
        $region65: #{tpu_custom_call.1} parent=63 // pred_check
          %p447 = pneg %p54
        $region66: #{tpu_custom_call.1} parent=63 // pred_check_branch
          %449 = sbr.rel (%p447) target = $region68
        $region67: #{tpu_custom_call.1} parent=63 // pred_region
          %450 = dma.done %s443, 128
        $region68: #{tpu_custom_call.1} parent=63 // pred_fallthru
          _
        %s451 = sand.u32 %s33, 1
        %s452 = scalar_lea.sflag [#allocation6], %s451
        %s453 = sand.u32 %s67, 1
        %s454 = smul.addr %s453, 8
        %s455 = scalar_lea.vmem [#allocation5], %s454
        // Predicated region
        $region69: #{tpu_custom_call.1} parent=63 // pred_check
          %p456 = pneg %p80
        $region70: #{tpu_custom_call.1} parent=63 // pred_check_branch
          %458 = sbr.rel (%p456) target = $region72
        $region71: #{tpu_custom_call.1} parent=63 // pred_region
          %459 = dma.done %s452, 128
        $region72: #{tpu_custom_call.1} parent=63 // pred_fallthru
          _
        %s460 = sand.u32 %s33, 1
        %s461 = scalar_lea.sflag [#allocation6], %s460
        %s462 = sand.u32 %s93, 1
        %s463 = smul.addr %s462, 8
        %s464 = scalar_lea.vmem [#allocation7], %s463
        // Predicated region
        $region73: #{tpu_custom_call.1} parent=63 // pred_check
          %p465 = pneg %p106
        $region74: #{tpu_custom_call.1} parent=63 // pred_check_branch
          %467 = sbr.rel (%p465) target = $region76
        $region75: #{tpu_custom_call.1} parent=63 // pred_region
          %468 = dma.done %s461, 128
        $region76: #{tpu_custom_call.1} parent=63 // pred_fallthru
          _
        // Predicated region
        $region77: #{tpu_custom_call.1} parent=63 // pred_check
          %p469 = pneg %p127
        $region78: #{tpu_custom_call.1} parent=63 // pred_check_branch
          %471 = sbr.rel (%p469) target = $region80
        $region79: #{tpu_custom_call.1} parent=63 // pred_region
          %472 = dma.done [#allocation9], 512
        $region80: #{tpu_custom_call.1} parent=63 // pred_fallthru
          _
        // Predicated region
        $region81: #{tpu_custom_call.1} parent=63 // pred_check
          %p473 = pneg %p148
        $region82: #{tpu_custom_call.1} parent=63 // pred_check_branch
          %475 = sbr.rel (%p473) target = $region84
        $region83: #{tpu_custom_call.1} parent=63 // pred_region
          %476 = dma.done [#allocation9], 512
        $region84: #{tpu_custom_call.1} parent=63 // pred_fallthru
          _
        // Predicated region
        $region85: #{tpu_custom_call.1} parent=63 // pred_check
          %p477 = pneg %p169
        $region86: #{tpu_custom_call.1} parent=63 // pred_check_branch
          %479 = sbr.rel (%p477) target = $region88
        $region87: #{tpu_custom_call.1} parent=63 // pred_region
          %480 = dma.done [#allocation12], 512
        $region88: #{tpu_custom_call.1} parent=63 // pred_fallthru
          _
        // Predicated region
        $region89: #{tpu_custom_call.1} parent=63 // pred_check
          %p481 = pneg %p232
        $region90: #{tpu_custom_call.1} parent=63 // pred_check_branch
          %483 = sbr.rel (%p481) target = $region92
        $region91: #{tpu_custom_call.1} parent=63 // pred_region
          %484 = dma.done [#allocation12], 16
        $region92: #{tpu_custom_call.1} parent=63 // pred_fallthru
          _
        %s485 = sand.u32 %s41, 1
        %s486 = scalar_lea.sflag [#allocation3], %s485
        %s487 = sand.u32 %s41, 1
        %s488 = smul.addr %s487, 8
        %s489 = scalar_lea.vmem [#allocation2], %s488
        %p490 = pneg %p54
        %p491 = pneg %p51
        %s492 = sand.u32 %s33, 1
        %s493 = scalar_lea.sflag [#allocation6], %s492
        %s494 = sand.u32 %s67, 1
        %s495 = smul.addr %s494, 8
        %s496 = scalar_lea.vmem [#allocation5], %s495
        %p497 = pneg %p80
        %p498 = pneg %p77
        %s499 = sand.u32 %s33, 1
        %s500 = scalar_lea.sflag [#allocation6], %s499
        %s501 = sand.u32 %s93, 1
        %s502 = smul.addr %s501, 8
        %s503 = scalar_lea.vmem [#allocation7], %s502
        %p504 = pneg %p106
        %p505 = pneg %p103
        %p506 = pneg %p127
        %p507 = pneg %p124
        %p508 = pneg %p148
        %p509 = pneg %p145
        %p510 = pneg %p169
        %p511 = pneg %p166
        %p512 = pneg %p190
        %p513 = pneg %p187
        %p514 = pneg %p211
        %p515 = pneg %p208
        %p516 = pneg %p232
        %p517 = pneg %p229
        %p518 = pneg %p253
        %p519 = pneg %p250
        %p520 = pneg %p274
        %p521 = pneg %p271
        %p522 = pneg %p300
        %p523 = pneg %p297
        %s524 = sand.u32 %s287, 1
        %s525 = scalar_lea.sflag [#allocation4], %s524
        %s526 = sand.u32 %s287, 1
        %s527 = smul.addr %s526, 8
        %s528 = scalar_lea.vmem [#allocation14], %s527
        %v529 = vld [vmem:[%s446] sm:$0xff]
        %v530 = vld [vmem:[#allocation8] sm:$0xff]
        %v531 = vld [vmem:[#allocation8 + $0x8] sm:$0xff]
        %v532 = vld [vmem:[#allocation8 + $0x10] sm:$0xff]
        %v533 = vld [vmem:[#allocation8 + $0x18] sm:$0xff]
        %v534 = vld [vmem:[%s6] sm:$0x1]
        %v536 = vlaneseq
        %v537 = vshrl.u32 %v536, 7
        %v538 = vsub.s32 0, %v537
        %v539 = vrot.slane %v534, %v538
        %vm541 = vcmask 261120
        %v543 = vsel %vm541, %v529, 0
        %545 = vmatprep.subr.mxu0 0.0
        %546 = vmatpush1.msra.mxu0 %v530
        %547 = vmatprep.subr.mxu0 0.0
        %548 = vmatpush1.msra.mxu0 %v531
        %549 = vmatprep.subr.mxu0 0.0
        %550 = vmatpush1.msra.mxu0 %v532
        %551 = vmatprep.subr.mxu0 0.0
        %552 = vmatpush1.msra.mxu0 %v533
        %553 = vmatprep.subr.mxu0 0.0
        %554 = vmatpush1.msra.mxu0 0.0
        %555 = vmatprep.subr.mxu0 0.0
        %556 = vmatpush1.msra.mxu0 0.0
        %557 = vmatprep.subr.mxu0 0.0
        %558 = vmatpush1.msra.mxu0 0.0
        %559 = vmatprep.subr.mxu0 0.0
        %560 = vmatpush1.msra.mxu0 0.0
        %561 = vmatprep.subr.mxu0 0.0
        %562 = vmatpush1.msra.mxu0 0.0
        %563 = vmatprep.subr.mxu0 0.0
        %564 = vmatpush1.msra.mxu0 0.0
        %565 = vmatprep.subr.mxu0 0.0
        %566 = vmatpush1.msra.mxu0 0.0
        %567 = vmatprep.subr.mxu0 0.0
        %568 = vmatpush1.msra.mxu0 0.0
        %569 = vmatprep.subr.mxu0 0.0
        %570 = vmatpush1.msra.mxu0 0.0
        %571 = vmatprep.subr.mxu0 0.0
        %572 = vmatpush1.msra.mxu0 0.0
        %573 = vmatprep.subr.mxu0 0.0
        %574 = vmatpush1.msra.mxu0 0.0
        %575 = vmatprep.subr.mxu0 0.0
        %576 = vmatpush1.msra.mxu0 0.0
        %577 = vmatprep.subr.mxu0 0.0
        %578 = vmatpush1.msra.mxu0 0.0
        %579 = vmatprep.subr.mxu0 0.0
        %580 = vmatpush1.msra.mxu0 0.0
        %581 = vmatprep.subr.mxu0 0.0
        %582 = vmatpush1.msra.mxu0 0.0
        %583 = vmatprep.subr.mxu0 0.0
        %584 = vmatpush1.msra.mxu0 0.0
        %585 = vmatprep.subr.mxu0 0.0
        %586 = vmatpush1.msra.mxu0 0.0
        %587 = vmatprep.subr.mxu0 0.0
        %588 = vmatpush1.msra.mxu0 0.0
        %589 = vmatprep.subr.mxu0 0.0
        %590 = vmatpush1.msra.mxu0 0.0
        %591 = vmatprep.subr.mxu0 0.0
        %592 = vmatpush1.msra.mxu0 0.0
        %593 = vmatprep.subr.mxu0 0.0
        %594 = vmatpush1.msra.mxu0 0.0
        %595 = vmatprep.subr.mxu0 0.0
        %596 = vmatpush1.msra.mxu0 0.0
        %597 = vmatprep.subr.mxu0 0.0
        %598 = vmatpush1.msra.mxu0 0.0
        %599 = vmatprep.subr.mxu0 0.0
        %600 = vmatpush1.msra.mxu0 0.0
        %601 = vmatprep.subr.mxu0 0.0
        %602 = vmatpush1.msra.mxu0 0.0
        %603 = vmatprep.subr.mxu0 0.0
        %604 = vmatpush1.msra.mxu0 0.0
        %605 = vmatprep.subr.mxu0 0.0
        %606 = vmatpush1.msra.mxu0 0.0
        %607 = vmatprep.subr.mxu0 0.0
        %608 = vmatpush1.msra.mxu0 0.0
        %609 = vmatprep.mubr.f32.mxu0 0.0
        %610 = vmatmul.mubr.f32.gmra.mrb[0].mxu0 %v543
        %v611 = vpop.f32.mrb[0].mxu0
        %v612 = vadd.f32 %v539, %v611
        %v613 = vpop.f32.mrb[0].mxu0
        %614 = vdwg.mxu0
        %v615 = vld [vmem:[%s455] sm:$0xff]
        %v616 = vld [vmem:[#allocation10] sm:$0xff]
        %v617 = vld [vmem:[#allocation10 + $0x8] sm:$0xff]
        %v618 = vld [vmem:[#allocation10 + $0x10] sm:$0xff]
        %v619 = vld [vmem:[#allocation10 + $0x18] sm:$0xff]
        %v620 = vld [vmem:[%s7] sm:$0x1]
        %v622 = vlaneseq
        %v623 = vshrl.u32 %v622, 7
        %v624 = vsub.s32 0, %v623
        %v625 = vrot.slane %v620, %v624
        %v628 = vsel %vm541, %v615, 0
        %630 = vmatprep.subr.mxu0 0.0
        %631 = vmatpush1.msra.mxu0 %v616
        %632 = vmatprep.subr.mxu0 0.0
        %633 = vmatpush1.msra.mxu0 %v617
        %634 = vmatprep.subr.mxu0 0.0
        %635 = vmatpush1.msra.mxu0 %v618
        %636 = vmatprep.subr.mxu0 0.0
        %637 = vmatpush1.msra.mxu0 %v619
        %638 = vmatprep.subr.mxu0 0.0
        %639 = vmatpush1.msra.mxu0 0.0
        %640 = vmatprep.subr.mxu0 0.0
        %641 = vmatpush1.msra.mxu0 0.0
        %642 = vmatprep.subr.mxu0 0.0
        %643 = vmatpush1.msra.mxu0 0.0
        %644 = vmatprep.subr.mxu0 0.0
        %645 = vmatpush1.msra.mxu0 0.0
        %646 = vmatprep.subr.mxu0 0.0
        %647 = vmatpush1.msra.mxu0 0.0
        %648 = vmatprep.subr.mxu0 0.0
        %649 = vmatpush1.msra.mxu0 0.0
        %650 = vmatprep.subr.mxu0 0.0
        %651 = vmatpush1.msra.mxu0 0.0
        %652 = vmatprep.subr.mxu0 0.0
        %653 = vmatpush1.msra.mxu0 0.0
        %654 = vmatprep.subr.mxu0 0.0
        %655 = vmatpush1.msra.mxu0 0.0
        %656 = vmatprep.subr.mxu0 0.0
        %657 = vmatpush1.msra.mxu0 0.0
        %658 = vmatprep.subr.mxu0 0.0
        %659 = vmatpush1.msra.mxu0 0.0
        %660 = vmatprep.subr.mxu0 0.0
        %661 = vmatpush1.msra.mxu0 0.0
        %662 = vmatprep.subr.mxu0 0.0
        %663 = vmatpush1.msra.mxu0 0.0
        %664 = vmatprep.subr.mxu0 0.0
        %665 = vmatpush1.msra.mxu0 0.0
        %666 = vmatprep.subr.mxu0 0.0
        %667 = vmatpush1.msra.mxu0 0.0
        %668 = vmatprep.subr.mxu0 0.0
        %669 = vmatpush1.msra.mxu0 0.0
        %670 = vmatprep.subr.mxu0 0.0
        %671 = vmatpush1.msra.mxu0 0.0
        %672 = vmatprep.subr.mxu0 0.0
        %673 = vmatpush1.msra.mxu0 0.0
        %674 = vmatprep.subr.mxu0 0.0
        %675 = vmatpush1.msra.mxu0 0.0
        %676 = vmatprep.subr.mxu0 0.0
        %677 = vmatpush1.msra.mxu0 0.0
        %678 = vmatprep.subr.mxu0 0.0
        %679 = vmatpush1.msra.mxu0 0.0
        %680 = vmatprep.subr.mxu0 0.0
        %681 = vmatpush1.msra.mxu0 0.0
        %682 = vmatprep.subr.mxu0 0.0
        %683 = vmatpush1.msra.mxu0 0.0
        %684 = vmatprep.subr.mxu0 0.0
        %685 = vmatpush1.msra.mxu0 0.0
        %686 = vmatprep.subr.mxu0 0.0
        %687 = vmatpush1.msra.mxu0 0.0
        %688 = vmatprep.subr.mxu0 0.0
        %689 = vmatpush1.msra.mxu0 0.0
        %690 = vmatprep.subr.mxu0 0.0
        %691 = vmatpush1.msra.mxu0 0.0
        %692 = vmatprep.subr.mxu0 0.0
        %693 = vmatpush1.msra.mxu0 0.0
        %694 = vmatprep.mubr.f32.mxu0 0.0
        %695 = vmatmul.mubr.f32.gmra.mrb[0].mxu0 %v628
        %v696 = vpop.f32.mrb[0].mxu0
        %v697 = vadd.f32 %v625, %v696
        %v698 = vpop.f32.mrb[0].mxu0
        %699 = vdwg.mxu0
        %v700 = vld [vmem:[%s464] sm:$0xff]
        %v701 = vld [vmem:[#allocation11] sm:$0xff]
        %v702 = vld [vmem:[#allocation11 + $0x8] sm:$0xff]
        %v703 = vld [vmem:[#allocation11 + $0x10] sm:$0xff]
        %v704 = vld [vmem:[#allocation11 + $0x18] sm:$0xff]
        %v705 = vld [vmem:[#allocation13] sm:$0x1]
        %v707 = vlaneseq
        %v708 = vshrl.u32 %v707, 7
        %v709 = vsub.s32 0, %v708
        %v710 = vrot.slane %v705, %v709
        %v713 = vsel %vm541, %v700, 0
        %715 = vmatprep.subr.mxu0 0.0
        %716 = vmatpush1.msra.mxu0 %v701
        %717 = vmatprep.subr.mxu0 0.0
        %718 = vmatpush1.msra.mxu0 %v702
        %719 = vmatprep.subr.mxu0 0.0
        %720 = vmatpush1.msra.mxu0 %v703
        %721 = vmatprep.subr.mxu0 0.0
        %722 = vmatpush1.msra.mxu0 %v704
        %723 = vmatprep.subr.mxu0 0.0
        %724 = vmatpush1.msra.mxu0 0.0
        %725 = vmatprep.subr.mxu0 0.0
        %726 = vmatpush1.msra.mxu0 0.0
        %727 = vmatprep.subr.mxu0 0.0
        %728 = vmatpush1.msra.mxu0 0.0
        %729 = vmatprep.subr.mxu0 0.0
        %730 = vmatpush1.msra.mxu0 0.0
        %731 = vmatprep.subr.mxu0 0.0
        %732 = vmatpush1.msra.mxu0 0.0
        %733 = vmatprep.subr.mxu0 0.0
        %734 = vmatpush1.msra.mxu0 0.0
        %735 = vmatprep.subr.mxu0 0.0
        %736 = vmatpush1.msra.mxu0 0.0
        %737 = vmatprep.subr.mxu0 0.0
        %738 = vmatpush1.msra.mxu0 0.0
        %739 = vmatprep.subr.mxu0 0.0
        %740 = vmatpush1.msra.mxu0 0.0
        %741 = vmatprep.subr.mxu0 0.0
        %742 = vmatpush1.msra.mxu0 0.0
        %743 = vmatprep.subr.mxu0 0.0
        %744 = vmatpush1.msra.mxu0 0.0
        %745 = vmatprep.subr.mxu0 0.0
        %746 = vmatpush1.msra.mxu0 0.0
        %747 = vmatprep.subr.mxu0 0.0
        %748 = vmatpush1.msra.mxu0 0.0
        %749 = vmatprep.subr.mxu0 0.0
        %750 = vmatpush1.msra.mxu0 0.0
        %751 = vmatprep.subr.mxu0 0.0
        %752 = vmatpush1.msra.mxu0 0.0
        %753 = vmatprep.subr.mxu0 0.0
        %754 = vmatpush1.msra.mxu0 0.0
        %755 = vmatprep.subr.mxu0 0.0
        %756 = vmatpush1.msra.mxu0 0.0
        %757 = vmatprep.subr.mxu0 0.0
        %758 = vmatpush1.msra.mxu0 0.0
        %759 = vmatprep.subr.mxu0 0.0
        %760 = vmatpush1.msra.mxu0 0.0
        %761 = vmatprep.subr.mxu0 0.0
        %762 = vmatpush1.msra.mxu0 0.0
        %763 = vmatprep.subr.mxu0 0.0
        %764 = vmatpush1.msra.mxu0 0.0
        %765 = vmatprep.subr.mxu0 0.0
        %766 = vmatpush1.msra.mxu0 0.0
        %767 = vmatprep.subr.mxu0 0.0
        %768 = vmatpush1.msra.mxu0 0.0
        %769 = vmatprep.subr.mxu0 0.0
        %770 = vmatpush1.msra.mxu0 0.0
        %771 = vmatprep.subr.mxu0 0.0
        %772 = vmatpush1.msra.mxu0 0.0
        %773 = vmatprep.subr.mxu0 0.0
        %774 = vmatpush1.msra.mxu0 0.0
        %775 = vmatprep.subr.mxu0 0.0
        %776 = vmatpush1.msra.mxu0 0.0
        %777 = vmatprep.subr.mxu0 0.0
        %778 = vmatpush1.msra.mxu0 0.0
        %779 = vmatprep.mubr.f32.mxu0 0.0
        %780 = vmatmul.mubr.f32.gmra.mrb[0].mxu0 %v713
        %v781 = vpop.f32.mrb[0].mxu0
        %v782 = vadd.f32 %v710, %v781
        %v783 = vpop.f32.mrb[0].mxu0
        %784 = vdwg.mxu0
        %v785 = vmul.f32 %v612, 0.35355338
        %vm786 = vcmask 64512
        %v788 = vsel %vm786, %v785, 0
        %v791 = vsel %vm786, %v697, 0
        %793 = vmatprep.subr.mxu0 0.0
        %794 = vmatpush1.xpose.msra.mxu0 %v791
        %795 = vmatprep.subr.mxu0 0.0
        %796 = vmatpush1.xpose.msra.mxu0 0.0
        %797 = vmatprep.subr.mxu0 0.0
        %798 = vmatpush1.xpose.msra.mxu0 0.0
        %799 = vmatprep.subr.mxu0 0.0
        %800 = vmatpush1.xpose.msra.mxu0 0.0
        %801 = vmatprep.subr.mxu0 0.0
        %802 = vmatpush1.xpose.msra.mxu0 0.0
        %803 = vmatprep.subr.mxu0 0.0
        %804 = vmatpush1.xpose.msra.mxu0 0.0
        %805 = vmatprep.subr.mxu0 0.0
        %806 = vmatpush1.xpose.msra.mxu0 0.0
        %807 = vmatprep.subr.mxu0 0.0
        %808 = vmatpush1.xpose.msra.mxu0 0.0
        %809 = vmatprep.subr.mxu0 0.0
        %810 = vmatpush1.xpose.msra.mxu0 0.0
        %811 = vmatprep.subr.mxu0 0.0
        %812 = vmatpush1.xpose.msra.mxu0 0.0
        %813 = vmatprep.subr.mxu0 0.0
        %814 = vmatpush1.xpose.msra.mxu0 0.0
        %815 = vmatprep.subr.mxu0 0.0
        %816 = vmatpush1.xpose.msra.mxu0 0.0
        %817 = vmatprep.subr.mxu0 0.0
        %818 = vmatpush1.xpose.msra.mxu0 0.0
        %819 = vmatprep.subr.mxu0 0.0
        %820 = vmatpush1.xpose.msra.mxu0 0.0
        %821 = vmatprep.subr.mxu0 0.0
        %822 = vmatpush1.xpose.msra.mxu0 0.0
        %823 = vmatprep.subr.mxu0 0.0
        %824 = vmatpush1.xpose.msra.mxu0 0.0
        %825 = vmatprep.subr.mxu0 0.0
        %826 = vmatpush1.xpose.msra.mxu0 0.0
        %827 = vmatprep.subr.mxu0 0.0
        %828 = vmatpush1.xpose.msra.mxu0 0.0
        %829 = vmatprep.subr.mxu0 0.0
        %830 = vmatpush1.xpose.msra.mxu0 0.0
        %831 = vmatprep.subr.mxu0 0.0
        %832 = vmatpush1.xpose.msra.mxu0 0.0
        %833 = vmatprep.subr.mxu0 0.0
        %834 = vmatpush1.xpose.msra.mxu0 0.0
        %835 = vmatprep.subr.mxu0 0.0
        %836 = vmatpush1.xpose.msra.mxu0 0.0
        %837 = vmatprep.subr.mxu0 0.0
        %838 = vmatpush1.xpose.msra.mxu0 0.0
        %839 = vmatprep.subr.mxu0 0.0
        %840 = vmatpush1.xpose.msra.mxu0 0.0
        %841 = vmatprep.subr.mxu0 0.0
        %842 = vmatpush1.xpose.msra.mxu0 0.0
        %843 = vmatprep.subr.mxu0 0.0
        %844 = vmatpush1.xpose.msra.mxu0 0.0
        %845 = vmatprep.subr.mxu0 0.0
        %846 = vmatpush1.xpose.msra.mxu0 0.0
        %847 = vmatprep.subr.mxu0 0.0
        %848 = vmatpush1.xpose.msra.mxu0 0.0
        %849 = vmatprep.subr.mxu0 0.0
        %850 = vmatpush1.xpose.msra.mxu0 0.0
        %851 = vmatprep.subr.mxu0 0.0
        %852 = vmatpush1.xpose.msra.mxu0 0.0
        %853 = vmatprep.subr.mxu0 0.0
        %854 = vmatpush1.xpose.msra.mxu0 0.0
        %855 = vmatprep.subr.mxu0 0.0
        %856 = vmatpush1.xpose.msra.mxu0 0.0
        %857 = vmatprep.mubr.f32.mxu0 0.0
        %858 = vmatmul.mubr.f32.gmra.mrb[0].mxu0 %v788
        %v859 = vpop.f32.mrb[0].mxu0
        %v860 = vadd.f32 0.0, %v859
        %v861 = vpop.f32.mrb[0].mxu0
        %862 = vdwg.mxu0
        %863 = vrot.lane.b32.xlu0 %v785, 120
        %v864 = vpop.permute.xlu0 %863
        %865 = vrot.lane.b32.xlu0 %v697, 120
        %v866 = vpop.permute.xlu0 %865
        %v867 = vsel %vm786, %v864, 0
        %v869 = vsel %vm786, %v866, 0
        %871 = vmatprep.subr.mxu0 0.0
        %872 = vmatpush1.xpose.msra.mxu0 %v869
        %873 = vmatprep.subr.mxu0 0.0
        %874 = vmatpush1.xpose.msra.mxu0 0.0
        %875 = vmatprep.subr.mxu0 0.0
        %876 = vmatpush1.xpose.msra.mxu0 0.0
        %877 = vmatprep.subr.mxu0 0.0
        %878 = vmatpush1.xpose.msra.mxu0 0.0
        %879 = vmatprep.subr.mxu0 0.0
        %880 = vmatpush1.xpose.msra.mxu0 0.0
        %881 = vmatprep.subr.mxu0 0.0
        %882 = vmatpush1.xpose.msra.mxu0 0.0
        %883 = vmatprep.subr.mxu0 0.0
        %884 = vmatpush1.xpose.msra.mxu0 0.0
        %885 = vmatprep.subr.mxu0 0.0
        %886 = vmatpush1.xpose.msra.mxu0 0.0
        %887 = vmatprep.subr.mxu0 0.0
        %888 = vmatpush1.xpose.msra.mxu0 0.0
        %889 = vmatprep.subr.mxu0 0.0
        %890 = vmatpush1.xpose.msra.mxu0 0.0
        %891 = vmatprep.subr.mxu0 0.0
        %892 = vmatpush1.xpose.msra.mxu0 0.0
        %893 = vmatprep.subr.mxu0 0.0
        %894 = vmatpush1.xpose.msra.mxu0 0.0
        %895 = vmatprep.subr.mxu0 0.0
        %896 = vmatpush1.xpose.msra.mxu0 0.0
        %897 = vmatprep.subr.mxu0 0.0
        %898 = vmatpush1.xpose.msra.mxu0 0.0
        %899 = vmatprep.subr.mxu0 0.0
        %900 = vmatpush1.xpose.msra.mxu0 0.0
        %901 = vmatprep.subr.mxu0 0.0
        %902 = vmatpush1.xpose.msra.mxu0 0.0
        %903 = vmatprep.subr.mxu0 0.0
        %904 = vmatpush1.xpose.msra.mxu0 0.0
        %905 = vmatprep.subr.mxu0 0.0
        %906 = vmatpush1.xpose.msra.mxu0 0.0
        %907 = vmatprep.subr.mxu0 0.0
        %908 = vmatpush1.xpose.msra.mxu0 0.0
        %909 = vmatprep.subr.mxu0 0.0
        %910 = vmatpush1.xpose.msra.mxu0 0.0
        %911 = vmatprep.subr.mxu0 0.0
        %912 = vmatpush1.xpose.msra.mxu0 0.0
        %913 = vmatprep.subr.mxu0 0.0
        %914 = vmatpush1.xpose.msra.mxu0 0.0
        %915 = vmatprep.subr.mxu0 0.0
        %916 = vmatpush1.xpose.msra.mxu0 0.0
        %917 = vmatprep.subr.mxu0 0.0
        %918 = vmatpush1.xpose.msra.mxu0 0.0
        %919 = vmatprep.subr.mxu0 0.0
        %920 = vmatpush1.xpose.msra.mxu0 0.0
        %921 = vmatprep.subr.mxu0 0.0
        %922 = vmatpush1.xpose.msra.mxu0 0.0
        %923 = vmatprep.subr.mxu0 0.0
        %924 = vmatpush1.xpose.msra.mxu0 0.0
        %925 = vmatprep.subr.mxu0 0.0
        %926 = vmatpush1.xpose.msra.mxu0 0.0
        %927 = vmatprep.subr.mxu0 0.0
        %928 = vmatpush1.xpose.msra.mxu0 0.0
        %929 = vmatprep.subr.mxu0 0.0
        %930 = vmatpush1.xpose.msra.mxu0 0.0
        %931 = vmatprep.subr.mxu0 0.0
        %932 = vmatpush1.xpose.msra.mxu0 0.0
        %933 = vmatprep.subr.mxu0 0.0
        %934 = vmatpush1.xpose.msra.mxu0 0.0
        %935 = vmatprep.mubr.f32.mxu0 0.0
        %936 = vmatmul.mubr.f32.gmra.mrb[0].mxu0 %v867
        %v937 = vpop.f32.mrb[0].mxu0
        %v938 = vadd.f32 0.0, %v937
        %v939 = vpop.f32.mrb[0].mxu0
        %940 = vdwg.mxu0
        %941 = vrot.lane.b32.xlu0 %v785, 112
        %v942 = vpop.permute.xlu0 %941
        %943 = vrot.lane.b32.xlu0 %v697, 112
        %v944 = vpop.permute.xlu0 %943
        %v945 = vsel %vm786, %v942, 0
        %v947 = vsel %vm786, %v944, 0
        %949 = vmatprep.subr.mxu0 0.0
        %950 = vmatpush1.xpose.msra.mxu0 %v947
        %951 = vmatprep.subr.mxu0 0.0
        %952 = vmatpush1.xpose.msra.mxu0 0.0
        %953 = vmatprep.subr.mxu0 0.0
        %954 = vmatpush1.xpose.msra.mxu0 0.0
        %955 = vmatprep.subr.mxu0 0.0
        %956 = vmatpush1.xpose.msra.mxu0 0.0
        %957 = vmatprep.subr.mxu0 0.0
        %958 = vmatpush1.xpose.msra.mxu0 0.0
        %959 = vmatprep.subr.mxu0 0.0
        %960 = vmatpush1.xpose.msra.mxu0 0.0
        %961 = vmatprep.subr.mxu0 0.0
        %962 = vmatpush1.xpose.msra.mxu0 0.0
        %963 = vmatprep.subr.mxu0 0.0
        %964 = vmatpush1.xpose.msra.mxu0 0.0
        %965 = vmatprep.subr.mxu0 0.0
        %966 = vmatpush1.xpose.msra.mxu0 0.0
        %967 = vmatprep.subr.mxu0 0.0
        %968 = vmatpush1.xpose.msra.mxu0 0.0
        %969 = vmatprep.subr.mxu0 0.0
        %970 = vmatpush1.xpose.msra.mxu0 0.0
        %971 = vmatprep.subr.mxu0 0.0
        %972 = vmatpush1.xpose.msra.mxu0 0.0
        %973 = vmatprep.subr.mxu0 0.0
        %974 = vmatpush1.xpose.msra.mxu0 0.0
        %975 = vmatprep.subr.mxu0 0.0
        %976 = vmatpush1.xpose.msra.mxu0 0.0
        %977 = vmatprep.subr.mxu0 0.0
        %978 = vmatpush1.xpose.msra.mxu0 0.0
        %979 = vmatprep.subr.mxu0 0.0
        %980 = vmatpush1.xpose.msra.mxu0 0.0
        %981 = vmatprep.subr.mxu0 0.0
        %982 = vmatpush1.xpose.msra.mxu0 0.0
        %983 = vmatprep.subr.mxu0 0.0
        %984 = vmatpush1.xpose.msra.mxu0 0.0
        %985 = vmatprep.subr.mxu0 0.0
        %986 = vmatpush1.xpose.msra.mxu0 0.0
        %987 = vmatprep.subr.mxu0 0.0
        %988 = vmatpush1.xpose.msra.mxu0 0.0
        %989 = vmatprep.subr.mxu0 0.0
        %990 = vmatpush1.xpose.msra.mxu0 0.0
        %991 = vmatprep.subr.mxu0 0.0
        %992 = vmatpush1.xpose.msra.mxu0 0.0
        %993 = vmatprep.subr.mxu0 0.0
        %994 = vmatpush1.xpose.msra.mxu0 0.0
        %995 = vmatprep.subr.mxu0 0.0
        %996 = vmatpush1.xpose.msra.mxu0 0.0
        %997 = vmatprep.subr.mxu0 0.0
        %998 = vmatpush1.xpose.msra.mxu0 0.0
        %999 = vmatprep.subr.mxu0 0.0
        %1000 = vmatpush1.xpose.msra.mxu0 0.0
        %1001 = vmatprep.subr.mxu0 0.0
        %1002 = vmatpush1.xpose.msra.mxu0 0.0
        %1003 = vmatprep.subr.mxu0 0.0
        %1004 = vmatpush1.xpose.msra.mxu0 0.0
        %1005 = vmatprep.subr.mxu0 0.0
        %1006 = vmatpush1.xpose.msra.mxu0 0.0
        %1007 = vmatprep.subr.mxu0 0.0
        %1008 = vmatpush1.xpose.msra.mxu0 0.0
        %1009 = vmatprep.subr.mxu0 0.0
        %1010 = vmatpush1.xpose.msra.mxu0 0.0
        %1011 = vmatprep.subr.mxu0 0.0
        %1012 = vmatpush1.xpose.msra.mxu0 0.0
        %1013 = vmatprep.mubr.f32.mxu0 0.0
        %1014 = vmatmul.mubr.f32.gmra.mrb[0].mxu0 %v945
        %v1015 = vpop.f32.mrb[0].mxu0
        %v1016 = vadd.f32 0.0, %v1015
        %v1017 = vpop.f32.mrb[0].mxu0
        %1018 = vdwg.mxu0
        %1019 = vrot.lane.b32.xlu0 %v785, 104
        %v1020 = vpop.permute.xlu0 %1019
        %1021 = vrot.lane.b32.xlu0 %v697, 104
        %v1022 = vpop.permute.xlu0 %1021
        %v1023 = vsel %vm786, %v1020, 0
        %v1025 = vsel %vm786, %v1022, 0
        %1027 = vmatprep.subr.mxu0 0.0
        %1028 = vmatpush1.xpose.msra.mxu0 %v1025
        %1029 = vmatprep.subr.mxu0 0.0
        %1030 = vmatpush1.xpose.msra.mxu0 0.0
        %1031 = vmatprep.subr.mxu0 0.0
        %1032 = vmatpush1.xpose.msra.mxu0 0.0
        %1033 = vmatprep.subr.mxu0 0.0
        %1034 = vmatpush1.xpose.msra.mxu0 0.0
        %1035 = vmatprep.subr.mxu0 0.0
        %1036 = vmatpush1.xpose.msra.mxu0 0.0
        %1037 = vmatprep.subr.mxu0 0.0
        %1038 = vmatpush1.xpose.msra.mxu0 0.0
        %1039 = vmatprep.subr.mxu0 0.0
        %1040 = vmatpush1.xpose.msra.mxu0 0.0
        %1041 = vmatprep.subr.mxu0 0.0
        %1042 = vmatpush1.xpose.msra.mxu0 0.0
        %1043 = vmatprep.subr.mxu0 0.0
        %1044 = vmatpush1.xpose.msra.mxu0 0.0
        %1045 = vmatprep.subr.mxu0 0.0
        %1046 = vmatpush1.xpose.msra.mxu0 0.0
        %1047 = vmatprep.subr.mxu0 0.0
        %1048 = vmatpush1.xpose.msra.mxu0 0.0
        %1049 = vmatprep.subr.mxu0 0.0
        %1050 = vmatpush1.xpose.msra.mxu0 0.0
        %1051 = vmatprep.subr.mxu0 0.0
        %1052 = vmatpush1.xpose.msra.mxu0 0.0
        %1053 = vmatprep.subr.mxu0 0.0
        %1054 = vmatpush1.xpose.msra.mxu0 0.0
        %1055 = vmatprep.subr.mxu0 0.0
        %1056 = vmatpush1.xpose.msra.mxu0 0.0
        %1057 = vmatprep.subr.mxu0 0.0
        %1058 = vmatpush1.xpose.msra.mxu0 0.0
        %1059 = vmatprep.subr.mxu0 0.0
        %1060 = vmatpush1.xpose.msra.mxu0 0.0
        %1061 = vmatprep.subr.mxu0 0.0
        %1062 = vmatpush1.xpose.msra.mxu0 0.0
        %1063 = vmatprep.subr.mxu0 0.0
        %1064 = vmatpush1.xpose.msra.mxu0 0.0
        %1065 = vmatprep.subr.mxu0 0.0
        %1066 = vmatpush1.xpose.msra.mxu0 0.0
        %1067 = vmatprep.subr.mxu0 0.0
        %1068 = vmatpush1.xpose.msra.mxu0 0.0
        %1069 = vmatprep.subr.mxu0 0.0
        %1070 = vmatpush1.xpose.msra.mxu0 0.0
        %1071 = vmatprep.subr.mxu0 0.0
        %1072 = vmatpush1.xpose.msra.mxu0 0.0
        %1073 = vmatprep.subr.mxu0 0.0
        %1074 = vmatpush1.xpose.msra.mxu0 0.0
        %1075 = vmatprep.subr.mxu0 0.0
        %1076 = vmatpush1.xpose.msra.mxu0 0.0
        %1077 = vmatprep.subr.mxu0 0.0
        %1078 = vmatpush1.xpose.msra.mxu0 0.0
        %1079 = vmatprep.subr.mxu0 0.0
        %1080 = vmatpush1.xpose.msra.mxu0 0.0
        %1081 = vmatprep.subr.mxu0 0.0
        %1082 = vmatpush1.xpose.msra.mxu0 0.0
        %1083 = vmatprep.subr.mxu0 0.0
        %1084 = vmatpush1.xpose.msra.mxu0 0.0
        %1085 = vmatprep.subr.mxu0 0.0
        %1086 = vmatpush1.xpose.msra.mxu0 0.0
        %1087 = vmatprep.subr.mxu0 0.0
        %1088 = vmatpush1.xpose.msra.mxu0 0.0
        %1089 = vmatprep.subr.mxu0 0.0
        %1090 = vmatpush1.xpose.msra.mxu0 0.0
        %1091 = vmatprep.mubr.f32.mxu0 0.0
        %1092 = vmatmul.mubr.f32.gmra.mrb[0].mxu0 %v1023
        %v1093 = vpop.f32.mrb[0].mxu0
        %v1094 = vadd.f32 0.0, %v1093
        %v1095 = vpop.f32.mrb[0].mxu0
        %1096 = vdwg.mxu0
        %v1097 = vsel %vm786, %v860, -inf
        %1098 = vmax.xlane.f32.xlu0 %v1097
        %v1099 = vpop.xlane.xlu0 %1098
        %v1100 = vsel %vm786, %v938, -inf
        %1101 = vmax.xlane.f32.xlu0 %v1100
        %v1102 = vpop.xlane.xlu0 %1101
        %v1103 = vsel %vm786, %v1016, -inf
        %1104 = vmax.xlane.f32.xlu0 %v1103
        %v1105 = vpop.xlane.xlu0 %1104
        %v1106 = vsel %vm786, %v1094, -inf
        %1107 = vmax.xlane.f32.xlu0 %v1106
        %v1108 = vpop.xlane.xlu0 %1107
        %v1109 = vsub.f32 %v860, %v1099
        %v1110 = vsub.f32 %v938, %v1102
        %v1111 = vsub.f32 %v1016, %v1105
        %v1112 = vsub.f32 %v1094, %v1108
        %v1113 = vmul.f32 %v1109, 1.442695
        %v1114 = vpow.pop %v1113
        %v1115 = vmul.f32 %v1110, 1.442695
        %v1116 = vpow.pop %v1115
        %v1117 = vmul.f32 %v1111, 1.442695
        %v1118 = vpow.pop %v1117
        %v1119 = vmul.f32 %v1112, 1.442695
        %v1120 = vpow.pop %v1119
        %v1121 = vsel %vm786, %v1114, 0.0
        %1122 = vadd.xlane.f32.xlu0 %v1121
        %v1123 = vpop.xlane.xlu0 %1122
        %v1124 = vsel %vm786, %v1116, 0.0
        %1125 = vadd.xlane.f32.xlu0 %v1124
        %v1126 = vpop.xlane.xlu0 %1125
        %v1127 = vsel %vm786, %v1118, 0.0
        %1128 = vadd.xlane.f32.xlu0 %v1127
        %v1129 = vpop.xlane.xlu0 %1128
        %v1130 = vsel %vm786, %v1120, 0.0
        %1131 = vadd.xlane.f32.xlu0 %v1130
        %v1132 = vpop.xlane.xlu0 %1131
        %v1133 = vrcp.pop %v1123
        %v1134 = vrcp.pop %v1126
        %v1135 = vrcp.pop %v1129
        %v1136 = vrcp.pop %v1132
        %v1137 = vmul.f32 %v1123, %v1133
        %v1138 = vmul.f32 %v1126, %v1134
        %v1139 = vmul.f32 %v1129, %v1135
        %v1140 = vmul.f32 %v1132, %v1136
        %v1141 = vsub.f32 2.0, %v1137
        %v1142 = vsub.f32 2.0, %v1138
        %v1143 = vsub.f32 2.0, %v1139
        %v1144 = vsub.f32 2.0, %v1140
        %v1145 = vmul.f32 %v1133, %v1141
        %v1146 = vmul.f32 %v1134, %v1142
        %v1147 = vmul.f32 %v1135, %v1143
        %v1148 = vmul.f32 %v1136, %v1144
        %v1150 = vsel %vm786, %v1114, 0
        %1152 = vmatprep.subr.mxu0 0.0
        %1153 = vmatpush1.msra.mxu0 %v782
        %1154 = vmatprep.subr.mxu0 0.0
        %1155 = vmatpush1.msra.mxu0 0.0
        %1156 = vmatprep.subr.mxu0 0.0
        %1157 = vmatpush1.msra.mxu0 0.0
        %1158 = vmatprep.subr.mxu0 0.0
        %1159 = vmatpush1.msra.mxu0 0.0
        %1160 = vmatprep.subr.mxu0 0.0
        %1161 = vmatpush1.msra.mxu0 0.0
        %1162 = vmatprep.subr.mxu0 0.0
        %1163 = vmatpush1.msra.mxu0 0.0
        %1164 = vmatprep.subr.mxu0 0.0
        %1165 = vmatpush1.msra.mxu0 0.0
        %1166 = vmatprep.subr.mxu0 0.0
        %1167 = vmatpush1.msra.mxu0 0.0
        %1168 = vmatprep.subr.mxu0 0.0
        %1169 = vmatpush1.msra.mxu0 0.0
        %1170 = vmatprep.subr.mxu0 0.0
        %1171 = vmatpush1.msra.mxu0 0.0
        %1172 = vmatprep.subr.mxu0 0.0
        %1173 = vmatpush1.msra.mxu0 0.0
        %1174 = vmatprep.subr.mxu0 0.0
        %1175 = vmatpush1.msra.mxu0 0.0
        %1176 = vmatprep.subr.mxu0 0.0
        %1177 = vmatpush1.msra.mxu0 0.0
        %1178 = vmatprep.subr.mxu0 0.0
        %1179 = vmatpush1.msra.mxu0 0.0
        %1180 = vmatprep.subr.mxu0 0.0
        %1181 = vmatpush1.msra.mxu0 0.0
        %1182 = vmatprep.subr.mxu0 0.0
        %1183 = vmatpush1.msra.mxu0 0.0
        %1184 = vmatprep.subr.mxu0 0.0
        %1185 = vmatpush1.msra.mxu0 0.0
        %1186 = vmatprep.subr.mxu0 0.0
        %1187 = vmatpush1.msra.mxu0 0.0
        %1188 = vmatprep.subr.mxu0 0.0
        %1189 = vmatpush1.msra.mxu0 0.0
        %1190 = vmatprep.subr.mxu0 0.0
        %1191 = vmatpush1.msra.mxu0 0.0
        %1192 = vmatprep.subr.mxu0 0.0
        %1193 = vmatpush1.msra.mxu0 0.0
        %1194 = vmatprep.subr.mxu0 0.0
        %1195 = vmatpush1.msra.mxu0 0.0
        %1196 = vmatprep.subr.mxu0 0.0
        %1197 = vmatpush1.msra.mxu0 0.0
        %1198 = vmatprep.subr.mxu0 0.0
        %1199 = vmatpush1.msra.mxu0 0.0
        %1200 = vmatprep.subr.mxu0 0.0
        %1201 = vmatpush1.msra.mxu0 0.0
        %1202 = vmatprep.subr.mxu0 0.0
        %1203 = vmatpush1.msra.mxu0 0.0
        %1204 = vmatprep.subr.mxu0 0.0
        %1205 = vmatpush1.msra.mxu0 0.0
        %1206 = vmatprep.subr.mxu0 0.0
        %1207 = vmatpush1.msra.mxu0 0.0
        %1208 = vmatprep.subr.mxu0 0.0
        %1209 = vmatpush1.msra.mxu0 0.0
        %1210 = vmatprep.subr.mxu0 0.0
        %1211 = vmatpush1.msra.mxu0 0.0
        %1212 = vmatprep.subr.mxu0 0.0
        %1213 = vmatpush1.msra.mxu0 0.0
        %1214 = vmatprep.subr.mxu0 0.0
        %1215 = vmatpush1.msra.mxu0 0.0
        %1216 = vmatprep.mubr.f32.mxu0 0.0
        %1217 = vmatmul.mubr.f32.gmra.mrb[0].mxu0 %v1150
        %v1218 = vpop.f32.mrb[0].mxu0
        %v1219 = vadd.f32 0.0, %v1218
        %v1220 = vpop.f32.mrb[0].mxu0
        %1221 = vdwg.mxu0
        %v1222 = vmul.f32 %v1219, %v1145
        %1224 = vrot.lane.b32.xlu0 %v782, 120
        %v1225 = vpop.permute.xlu0 %1224
        %v1228 = vsel %vm786, %v1116, 0
        %1230 = vmatprep.subr.mxu0 0.0
        %1231 = vmatpush1.msra.mxu0 %v1225
        %1232 = vmatprep.subr.mxu0 0.0
        %1233 = vmatpush1.msra.mxu0 0.0
        %1234 = vmatprep.subr.mxu0 0.0
        %1235 = vmatpush1.msra.mxu0 0.0
        %1236 = vmatprep.subr.mxu0 0.0
        %1237 = vmatpush1.msra.mxu0 0.0
        %1238 = vmatprep.subr.mxu0 0.0
        %1239 = vmatpush1.msra.mxu0 0.0
        %1240 = vmatprep.subr.mxu0 0.0
        %1241 = vmatpush1.msra.mxu0 0.0
        %1242 = vmatprep.subr.mxu0 0.0
        %1243 = vmatpush1.msra.mxu0 0.0
        %1244 = vmatprep.subr.mxu0 0.0
        %1245 = vmatpush1.msra.mxu0 0.0
        %1246 = vmatprep.subr.mxu0 0.0
        %1247 = vmatpush1.msra.mxu0 0.0
        %1248 = vmatprep.subr.mxu0 0.0
        %1249 = vmatpush1.msra.mxu0 0.0
        %1250 = vmatprep.subr.mxu0 0.0
        %1251 = vmatpush1.msra.mxu0 0.0
        %1252 = vmatprep.subr.mxu0 0.0
        %1253 = vmatpush1.msra.mxu0 0.0
        %1254 = vmatprep.subr.mxu0 0.0
        %1255 = vmatpush1.msra.mxu0 0.0
        %1256 = vmatprep.subr.mxu0 0.0
        %1257 = vmatpush1.msra.mxu0 0.0
        %1258 = vmatprep.subr.mxu0 0.0
        %1259 = vmatpush1.msra.mxu0 0.0
        %1260 = vmatprep.subr.mxu0 0.0
        %1261 = vmatpush1.msra.mxu0 0.0
        %1262 = vmatprep.subr.mxu0 0.0
        %1263 = vmatpush1.msra.mxu0 0.0
        %1264 = vmatprep.subr.mxu0 0.0
        %1265 = vmatpush1.msra.mxu0 0.0
        %1266 = vmatprep.subr.mxu0 0.0
        %1267 = vmatpush1.msra.mxu0 0.0
        %1268 = vmatprep.subr.mxu0 0.0
        %1269 = vmatpush1.msra.mxu0 0.0
        %1270 = vmatprep.subr.mxu0 0.0
        %1271 = vmatpush1.msra.mxu0 0.0
        %1272 = vmatprep.subr.mxu0 0.0
        %1273 = vmatpush1.msra.mxu0 0.0
        %1274 = vmatprep.subr.mxu0 0.0
        %1275 = vmatpush1.msra.mxu0 0.0
        %1276 = vmatprep.subr.mxu0 0.0
        %1277 = vmatpush1.msra.mxu0 0.0
        %1278 = vmatprep.subr.mxu0 0.0
        %1279 = vmatpush1.msra.mxu0 0.0
        %1280 = vmatprep.subr.mxu0 0.0
        %1281 = vmatpush1.msra.mxu0 0.0
        %1282 = vmatprep.subr.mxu0 0.0
        %1283 = vmatpush1.msra.mxu0 0.0
        %1284 = vmatprep.subr.mxu0 0.0
        %1285 = vmatpush1.msra.mxu0 0.0
        %1286 = vmatprep.subr.mxu0 0.0
        %1287 = vmatpush1.msra.mxu0 0.0
        %1288 = vmatprep.subr.mxu0 0.0
        %1289 = vmatpush1.msra.mxu0 0.0
        %1290 = vmatprep.subr.mxu0 0.0
        %1291 = vmatpush1.msra.mxu0 0.0
        %1292 = vmatprep.subr.mxu0 0.0
        %1293 = vmatpush1.msra.mxu0 0.0
        %1294 = vmatprep.mubr.f32.mxu0 0.0
        %1295 = vmatmul.mubr.f32.gmra.mrb[0].mxu0 %v1228
        %v1296 = vpop.f32.mrb[0].mxu0
        %v1297 = vadd.f32 0.0, %v1296
        %v1298 = vpop.f32.mrb[0].mxu0
        %1299 = vdwg.mxu0
        %v1300 = vmul.f32 %v1297, %v1146
        %1301 = vrot.lane.b32.xlu0 %v782, 112
        %v1302 = vpop.permute.xlu0 %1301
        %v1305 = vsel %vm786, %v1118, 0
        %1307 = vmatprep.subr.mxu0 0.0
        %1308 = vmatpush1.msra.mxu0 %v1302
        %1309 = vmatprep.subr.mxu0 0.0
        %1310 = vmatpush1.msra.mxu0 0.0
        %1311 = vmatprep.subr.mxu0 0.0
        %1312 = vmatpush1.msra.mxu0 0.0
        %1313 = vmatprep.subr.mxu0 0.0
        %1314 = vmatpush1.msra.mxu0 0.0
        %1315 = vmatprep.subr.mxu0 0.0
        %1316 = vmatpush1.msra.mxu0 0.0
        %1317 = vmatprep.subr.mxu0 0.0
        %1318 = vmatpush1.msra.mxu0 0.0
        %1319 = vmatprep.subr.mxu0 0.0
        %1320 = vmatpush1.msra.mxu0 0.0
        %1321 = vmatprep.subr.mxu0 0.0
        %1322 = vmatpush1.msra.mxu0 0.0
        %1323 = vmatprep.subr.mxu0 0.0
        %1324 = vmatpush1.msra.mxu0 0.0
        %1325 = vmatprep.subr.mxu0 0.0
        %1326 = vmatpush1.msra.mxu0 0.0
        %1327 = vmatprep.subr.mxu0 0.0
        %1328 = vmatpush1.msra.mxu0 0.0
        %1329 = vmatprep.subr.mxu0 0.0
        %1330 = vmatpush1.msra.mxu0 0.0
        %1331 = vmatprep.subr.mxu0 0.0
        %1332 = vmatpush1.msra.mxu0 0.0
        %1333 = vmatprep.subr.mxu0 0.0
        %1334 = vmatpush1.msra.mxu0 0.0
        %1335 = vmatprep.subr.mxu0 0.0
        %1336 = vmatpush1.msra.mxu0 0.0
        %1337 = vmatprep.subr.mxu0 0.0
        %1338 = vmatpush1.msra.mxu0 0.0
        %1339 = vmatprep.subr.mxu0 0.0
        %1340 = vmatpush1.msra.mxu0 0.0
        %1341 = vmatprep.subr.mxu0 0.0
        %1342 = vmatpush1.msra.mxu0 0.0
        %1343 = vmatprep.subr.mxu0 0.0
        %1344 = vmatpush1.msra.mxu0 0.0
        %1345 = vmatprep.subr.mxu0 0.0
        %1346 = vmatpush1.msra.mxu0 0.0
        %1347 = vmatprep.subr.mxu0 0.0
        %1348 = vmatpush1.msra.mxu0 0.0
        %1349 = vmatprep.subr.mxu0 0.0
        %1350 = vmatpush1.msra.mxu0 0.0
        %1351 = vmatprep.subr.mxu0 0.0
        %1352 = vmatpush1.msra.mxu0 0.0
        %1353 = vmatprep.subr.mxu0 0.0
        %1354 = vmatpush1.msra.mxu0 0.0
        %1355 = vmatprep.subr.mxu0 0.0
        %1356 = vmatpush1.msra.mxu0 0.0
        %1357 = vmatprep.subr.mxu0 0.0
        %1358 = vmatpush1.msra.mxu0 0.0
        %1359 = vmatprep.subr.mxu0 0.0
        %1360 = vmatpush1.msra.mxu0 0.0
        %1361 = vmatprep.subr.mxu0 0.0
        %1362 = vmatpush1.msra.mxu0 0.0
        %1363 = vmatprep.subr.mxu0 0.0
        %1364 = vmatpush1.msra.mxu0 0.0
        %1365 = vmatprep.subr.mxu0 0.0
        %1366 = vmatpush1.msra.mxu0 0.0
        %1367 = vmatprep.subr.mxu0 0.0
        %1368 = vmatpush1.msra.mxu0 0.0
        %1369 = vmatprep.subr.mxu0 0.0
        %1370 = vmatpush1.msra.mxu0 0.0
        %1371 = vmatprep.mubr.f32.mxu0 0.0
        %1372 = vmatmul.mubr.f32.gmra.mrb[0].mxu0 %v1305
        %v1373 = vpop.f32.mrb[0].mxu0
        %v1374 = vadd.f32 0.0, %v1373
        %v1375 = vpop.f32.mrb[0].mxu0
        %1376 = vdwg.mxu0
        %v1377 = vmul.f32 %v1374, %v1147
        %1378 = vrot.lane.b32.xlu0 %v782, 104
        %v1379 = vpop.permute.xlu0 %1378
        %v1382 = vsel %vm786, %v1120, 0
        %1384 = vmatprep.subr.mxu0 0.0
        %1385 = vmatpush1.msra.mxu0 %v1379
        %1386 = vmatprep.subr.mxu0 0.0
        %1387 = vmatpush1.msra.mxu0 0.0
        %1388 = vmatprep.subr.mxu0 0.0
        %1389 = vmatpush1.msra.mxu0 0.0
        %1390 = vmatprep.subr.mxu0 0.0
        %1391 = vmatpush1.msra.mxu0 0.0
        %1392 = vmatprep.subr.mxu0 0.0
        %1393 = vmatpush1.msra.mxu0 0.0
        %1394 = vmatprep.subr.mxu0 0.0
        %1395 = vmatpush1.msra.mxu0 0.0
        %1396 = vmatprep.subr.mxu0 0.0
        %1397 = vmatpush1.msra.mxu0 0.0
        %1398 = vmatprep.subr.mxu0 0.0
        %1399 = vmatpush1.msra.mxu0 0.0
        %1400 = vmatprep.subr.mxu0 0.0
        %1401 = vmatpush1.msra.mxu0 0.0
        %1402 = vmatprep.subr.mxu0 0.0
        %1403 = vmatpush1.msra.mxu0 0.0
        %1404 = vmatprep.subr.mxu0 0.0
        %1405 = vmatpush1.msra.mxu0 0.0
        %1406 = vmatprep.subr.mxu0 0.0
        %1407 = vmatpush1.msra.mxu0 0.0
        %1408 = vmatprep.subr.mxu0 0.0
        %1409 = vmatpush1.msra.mxu0 0.0
        %1410 = vmatprep.subr.mxu0 0.0
        %1411 = vmatpush1.msra.mxu0 0.0
        %1412 = vmatprep.subr.mxu0 0.0
        %1413 = vmatpush1.msra.mxu0 0.0
        %1414 = vmatprep.subr.mxu0 0.0
        %1415 = vmatpush1.msra.mxu0 0.0
        %1416 = vmatprep.subr.mxu0 0.0
        %1417 = vmatpush1.msra.mxu0 0.0
        %1418 = vmatprep.subr.mxu0 0.0
        %1419 = vmatpush1.msra.mxu0 0.0
        %1420 = vmatprep.subr.mxu0 0.0
        %1421 = vmatpush1.msra.mxu0 0.0
        %1422 = vmatprep.subr.mxu0 0.0
        %1423 = vmatpush1.msra.mxu0 0.0
        %1424 = vmatprep.subr.mxu0 0.0
        %1425 = vmatpush1.msra.mxu0 0.0
        %1426 = vmatprep.subr.mxu0 0.0
        %1427 = vmatpush1.msra.mxu0 0.0
        %1428 = vmatprep.subr.mxu0 0.0
        %1429 = vmatpush1.msra.mxu0 0.0
        %1430 = vmatprep.subr.mxu0 0.0
        %1431 = vmatpush1.msra.mxu0 0.0
        %1432 = vmatprep.subr.mxu0 0.0
        %1433 = vmatpush1.msra.mxu0 0.0
        %1434 = vmatprep.subr.mxu0 0.0
        %1435 = vmatpush1.msra.mxu0 0.0
        %1436 = vmatprep.subr.mxu0 0.0
        %1437 = vmatpush1.msra.mxu0 0.0
        %1438 = vmatprep.subr.mxu0 0.0
        %1439 = vmatpush1.msra.mxu0 0.0
        %1440 = vmatprep.subr.mxu0 0.0
        %1441 = vmatpush1.msra.mxu0 0.0
        %1442 = vmatprep.subr.mxu0 0.0
        %1443 = vmatpush1.msra.mxu0 0.0
        %1444 = vmatprep.subr.mxu0 0.0
        %1445 = vmatpush1.msra.mxu0 0.0
        %1446 = vmatprep.subr.mxu0 0.0
        %1447 = vmatpush1.msra.mxu0 0.0
        %1448 = vmatprep.mubr.f32.mxu0 0.0
        %1449 = vmatmul.mubr.f32.gmra.mrb[0].mxu0 %v1382
        %v1450 = vpop.f32.mrb[0].mxu0
        %v1451 = vadd.f32 0.0, %v1450
        %v1452 = vpop.f32.mrb[0].mxu0
        %1453 = vdwg.mxu0
        %v1454 = vmul.f32 %v1451, %v1148
        %1456 = vrot.lane.b32.xlu0 %v1300, 8
        %v1457 = vpop.permute.xlu0 %1456
        %1460 = vrot.lane.b32.xlu0 %v1377, 16
        %v1461 = vpop.permute.xlu0 %1460
        %1464 = vrot.lane.b32.xlu0 %v1454, 24
        %v1465 = vpop.permute.xlu0 %1464
        %v1467 = vsel %vm786, %v1222, %v1457
        %vm1468 = vcmask 130048
        %v1469 = vsel %vm1468, %v1467, %v1461
        %vm1470 = vcmask 195584
        %v1471 = vsel %vm1470, %v1469, %v1465
        %v1472 = vld [vmem:[%s9] sm:$0xff]
        %v1473 = vld [vmem:[%s9 + $0x8] sm:$0xff]
        %v1474 = vld [vmem:[%s9 + $0x10] sm:$0xff]
        %v1475 = vld [vmem:[%s9 + $0x18] sm:$0xff]
        %v1476 = vld [vmem:[%s10] sm:$0x1]
        %v1478 = vlaneseq
        %v1479 = vshrl.u32 %v1478, 7
        %v1480 = vsub.s32 0, %v1479
        %v1481 = vrot.slane %v1476, %v1480
        %v1484 = vsel %vm541, %v1471, 0
        %1486 = vmatprep.subr.mxu0 0.0
        %1487 = vmatpush1.msra.mxu0 %v1472
        %1488 = vmatprep.subr.mxu0 0.0
        %1489 = vmatpush1.msra.mxu0 %v1473
        %1490 = vmatprep.subr.mxu0 0.0
        %1491 = vmatpush1.msra.mxu0 %v1474
        %1492 = vmatprep.subr.mxu0 0.0
        %1493 = vmatpush1.msra.mxu0 %v1475
        %1494 = vmatprep.subr.mxu0 0.0
        %1495 = vmatpush1.msra.mxu0 0.0
        %1496 = vmatprep.subr.mxu0 0.0
        %1497 = vmatpush1.msra.mxu0 0.0
        %1498 = vmatprep.subr.mxu0 0.0
        %1499 = vmatpush1.msra.mxu0 0.0
        %1500 = vmatprep.subr.mxu0 0.0
        %1501 = vmatpush1.msra.mxu0 0.0
        %1502 = vmatprep.subr.mxu0 0.0
        %1503 = vmatpush1.msra.mxu0 0.0
        %1504 = vmatprep.subr.mxu0 0.0
        %1505 = vmatpush1.msra.mxu0 0.0
        %1506 = vmatprep.subr.mxu0 0.0
        %1507 = vmatpush1.msra.mxu0 0.0
        %1508 = vmatprep.subr.mxu0 0.0
        %1509 = vmatpush1.msra.mxu0 0.0
        %1510 = vmatprep.subr.mxu0 0.0
        %1511 = vmatpush1.msra.mxu0 0.0
        %1512 = vmatprep.subr.mxu0 0.0
        %1513 = vmatpush1.msra.mxu0 0.0
        %1514 = vmatprep.subr.mxu0 0.0
        %1515 = vmatpush1.msra.mxu0 0.0
        %1516 = vmatprep.subr.mxu0 0.0
        %1517 = vmatpush1.msra.mxu0 0.0
        %1518 = vmatprep.subr.mxu0 0.0
        %1519 = vmatpush1.msra.mxu0 0.0
        %1520 = vmatprep.subr.mxu0 0.0
        %1521 = vmatpush1.msra.mxu0 0.0
        %1522 = vmatprep.subr.mxu0 0.0
        %1523 = vmatpush1.msra.mxu0 0.0
        %1524 = vmatprep.subr.mxu0 0.0
        %1525 = vmatpush1.msra.mxu0 0.0
        %1526 = vmatprep.subr.mxu0 0.0
        %1527 = vmatpush1.msra.mxu0 0.0
        %1528 = vmatprep.subr.mxu0 0.0
        %1529 = vmatpush1.msra.mxu0 0.0
        %1530 = vmatprep.subr.mxu0 0.0
        %1531 = vmatpush1.msra.mxu0 0.0
        %1532 = vmatprep.subr.mxu0 0.0
        %1533 = vmatpush1.msra.mxu0 0.0
        %1534 = vmatprep.subr.mxu0 0.0
        %1535 = vmatpush1.msra.mxu0 0.0
        %1536 = vmatprep.subr.mxu0 0.0
        %1537 = vmatpush1.msra.mxu0 0.0
        %1538 = vmatprep.subr.mxu0 0.0
        %1539 = vmatpush1.msra.mxu0 0.0
        %1540 = vmatprep.subr.mxu0 0.0
        %1541 = vmatpush1.msra.mxu0 0.0
        %1542 = vmatprep.subr.mxu0 0.0
        %1543 = vmatpush1.msra.mxu0 0.0
        %1544 = vmatprep.subr.mxu0 0.0
        %1545 = vmatpush1.msra.mxu0 0.0
        %1546 = vmatprep.subr.mxu0 0.0
        %1547 = vmatpush1.msra.mxu0 0.0
        %1548 = vmatprep.subr.mxu0 0.0
        %1549 = vmatpush1.msra.mxu0 0.0
        %1550 = vmatprep.mubr.f32.mxu0 0.0
        %1551 = vmatmul.mubr.f32.gmra.mrb[0].mxu0 %v1484
        %v1552 = vpop.f32.mrb[0].mxu0
        %v1553 = vadd.f32 %v1481, %v1552
        %v1554 = vpop.f32.mrb[0].mxu0
        %1555 = vdwg.mxu0
        %1556 = vst.msk [vmem:[%s528] sm:$0xff] %vm541, %v1553
        %s1557 = sand.u32 %s287, 1
        %s1558 = scalar_lea.sflag [#allocation4], %s1557
        %s1559 = sand.u32 %s287, 1
        %s1560 = smul.addr %s1559, 8
        %s1561 = scalar_lea.vmem [#allocation14], %s1560
        // Predicated region
        $region93: #{tpu_custom_call.1} parent=63 // pred_check
          %p1562 = pneg %p297
        $region94: #{tpu_custom_call.1} parent=63 // pred_check_branch
          %1564 = sbr.rel (%p1562) target = $region96
        $region95: #{tpu_custom_call.1} parent=63 // pred_region
          %s1566 = ssub.s32 128, 128
          %1567 = vsyncadd %s1558, %s1566
          %s1568 = smul.addr %s33, 128
          %s1569 = scalar_lea.hbm %s11, %s1568
          %s1571 = sshll.u32 %s1561, 4
          %s1572 = int_to_ptr.vmem [resolvable:$true] %s1571
          %1574 = dma.vmem_to_hbm [thread:$0]  %s1572, 128, %s1569, %s1558
        $region96: #{tpu_custom_call.1} parent=63 // pred_fallthru
          _
      $region64: #{tpu_custom_call.1} parent=5 // pred_fallthru
        _
      %p1575 = scmp.le.s32.totalorder 2, %s28
      // Predicated region
      $region97: #{tpu_custom_call.1} parent=5 // pred_check
        %p1576 = pneg %p1575
      $region98: #{tpu_custom_call.1} parent=5 // pred_check_branch
        %1578 = sbr.rel (%p1576) target = $region100
      $region99: #{tpu_custom_call.1} parent=5 // pred_region
        %s1579 = ssub.s32 %s28, 2
        // Predicated region
        $region101: #{tpu_custom_call.1} parent=99 // pred_check
          %p1580 = pneg %p303
        $region102: #{tpu_custom_call.1} parent=99 // pred_check_branch
          %1582 = sbr.rel (%p1580) target = $region104
        $region103: #{tpu_custom_call.1} parent=99 // pred_region
          %s1583 = sand.u32 %s288, 1
          %s1584 = scalar_lea.sflag [#allocation4], %s1583
          %s1585 = sand.u32 %s288, 1
          %s1586 = smul.addr %s1585, 8
          %s1587 = scalar_lea.vmem [#allocation14], %s1586
          %1588 = dma.done %s1584, 128
        $region104: #{tpu_custom_call.1} parent=99 // pred_fallthru
          _
      $region100: #{tpu_custom_call.1} parent=5 // pred_fallthru
        _
    $region6: #{tpu_custom_call.1} parent=1 // loop_footer
      %s32 = sadd.s32 1, %s28
    $region7: #{tpu_custom_call.1} parent=1 // loop_footer_branch
      %27 = sbr.rel target = $region3
    $region8: #{tpu_custom_call.1} parent=1 // loop_exit
      _
    %1589 = vsyncpa [#allocation3], 1
    %s1590 = scalar_lea.sflag [#allocation3], 1
    %1591 = vsyncpa %s1590, 1
    %1592 = vsyncpa [#allocation6], 1
    %s1593 = scalar_lea.sflag [#allocation6], 1
    %1594 = vsyncpa %s1593, 1
    %1595 = vsyncpa [#allocation9], 1
    %1596 = vsyncpa [#allocation12], 1
    %1597 = vsyncpa [#allocation4], 1
    %s1598 = scalar_lea.sflag [#allocation4], 1
    %1599 = vsyncpa %s1598, 1

</llo_original>
